<compile_context>
chip_gen: v5e
topology: v5e:2x2
jax: 0.10.0
libtpu: 0.0.40
codegen_flags: <defaults>
</compile_context>

<pallas_src>
import functools
import numpy as np
import jax
import jax.numpy as jnp
from jax import lax
from jax.experimental import pallas as pl
from jax.experimental.pallas import tpu as pltpu


# -------------------------- fused decoder kernel --------------------------

def _decoder_kernel(x_ref, enc_ref, encmask_ref,
                    wqkv_s_ref, bqkv_s_ref, wo_s_ref, bo_s_ref, ln1g_ref, ln1b_ref,
                    wq_c_ref, bq_c_ref, wkv_c_ref, bkv_c_ref, wo_c_ref, bo_c_ref,
                    ln2g_ref, ln2b_ref,
                    wff1_ref, bff1_ref, wff2_ref, bff2_ref, ln3g_ref, ln3b_ref,
                    o_ref, carry_ref, *, n_heads, eps):
    layer = pl.program_id(1)

    # Initialize the VMEM-resident activation carry with the embedded input.
    @pl.when(layer == 0)
    def _():
        carry_ref[...] = x_ref[0]

    x = carry_ref[...]                       # (T, D) f32
    T, D = x.shape
    hd = D // n_heads
    scale = 1.0 / float(np.sqrt(hd))

    def layernorm(y, g, b):
        mu = jnp.mean(y, axis=-1, keepdims=True)
        var = jnp.mean(jnp.square(y - mu), axis=-1, keepdims=True)
        return (y - mu) * lax.rsqrt(var + eps) * g + b

    def mha(q, k, v, keep):
        # q: (T, D) f32, k/v: (Tk, D) f32, keep broadcastable to (T, Tk), 1 = attend.
        outs = []
        for h in range(n_heads):
            sl = slice(h * hd, (h + 1) * hd)
            qh = q[:, sl].astype(jnp.bfloat16)
            kh = k[:, sl].astype(jnp.bfloat16)
            vh = v[:, sl].astype(jnp.bfloat16)
            # contract on head_dim without materializing K^T
            s = lax.dot_general(qh, kh, (((1,), (1,)), ((), ())),
                                preferred_element_type=jnp.float32) * scale
            s = jnp.where(keep, s, jnp.float32(-1e30))
            s = s - jnp.max(s, axis=-1, keepdims=True)
            p = jnp.exp(s)
            p = p * pl.reciprocal(jnp.sum(p, axis=-1, keepdims=True), approx=True)
            outs.append(jnp.dot(p.astype(jnp.bfloat16), vh,
                                preferred_element_type=jnp.float32))
        return jnp.concatenate(outs, axis=-1)            # (T, D) f32

    # ---- causal self-attention ----
    qkv = jnp.dot(x.astype(jnp.bfloat16), wqkv_s_ref[0],
                  preferred_element_type=jnp.float32) + bqkv_s_ref[0]   # (T, 3D)
    q, k, v = qkv[:, :D], qkv[:, D:2 * D], qkv[:, 2 * D:]
    row = lax.broadcasted_iota(jnp.int32, (T, T), 0)
    col = lax.broadcasted_iota(jnp.int32, (T, T), 1)
    attn = mha(q, k, v, col <= row)
    a = jnp.dot(attn.astype(jnp.bfloat16), wo_s_ref[0],
                preferred_element_type=jnp.float32) + bo_s_ref[0]
    x = layernorm(x + a, ln1g_ref[0], ln1b_ref[0])

    # ---- cross attention over encoder output ----
    enc = enc_ref[0]                                    # (Tk, D) bf16
    q = jnp.dot(x.astype(jnp.bfloat16), wq_c_ref[0],
                preferred_element_type=jnp.float32) + bq_c_ref[0]
    kv = jnp.dot(enc, wkv_c_ref[0],
                 preferred_element_type=jnp.float32) + bkv_c_ref[0]     # (Tk, 2D)
    k, v = kv[:, :D], kv[:, D:]
    keep = encmask_ref[0] > 0.0                         # (1, Tk) broadcasts over (T, Tk)
    attn = mha(q, k, v, keep)
    a = jnp.dot(attn.astype(jnp.bfloat16), wo_c_ref[0],
                preferred_element_type=jnp.float32) + bo_c_ref[0]
    x = layernorm(x + a, ln2g_ref[0], ln2b_ref[0])

    # ---- ReLU FFN ----
    h = jnp.dot(x.astype(jnp.bfloat16), wff1_ref[0],
                preferred_element_type=jnp.float32) + bff1_ref[0]
    h = jnp.maximum(h, 0.0)
    f = jnp.dot(h.astype(jnp.bfloat16), wff2_ref[0],
                preferred_element_type=jnp.float32) + bff2_ref[0]
    x = layernorm(x + f, ln3g_ref[0], ln3b_ref[0])

    carry_ref[...] = x

    @pl.when(layer == pl.num_programs(1) - 1)
    def _():
        o_ref[0] = x


# -------------------------- wrapper --------------------------

def transformer_decoder(params, tokens, encoder_output, encoder_mask, n_heads):
    B, T = tokens.shape
    emb = params["embeddings"]
    D = emb.shape[1]
    Tk = encoder_output.shape[1]
    st = params["stacked"]
    L = st["wqkv_self"].shape[0]

    # token embedding lookup (+ embeddings_scale) + positional embedding (glue;
    # a gather has no simple static-BlockSpec Pallas equivalent at this scale).
    x = jnp.take(emb, tokens, axis=0) * jnp.float32(np.sqrt(D))
    x = (x + params["pos_embeddings"][:T][None, :, :]).astype(jnp.float32)

    enc = encoder_output.astype(jnp.bfloat16)                       # (B, Tk, D)
    mask = encoder_mask.astype(jnp.float32).reshape(B, 1, Tk)       # 1 = attend

    weights = [
        st["wqkv_self"], st["bqkv_self"], st["wo_self"], st["bo_self"],
        st["ln1_g"], st["ln1_b"],
        st["wq_cross"], st["bq_cross"], st["wkv_cross"], st["bkv_cross"],
        st["wo_cross"], st["bo_cross"], st["ln2_g"], st["ln2_b"],
        st["w_ffn1"], st["b_ffn1"], st["w_ffn2"], st["b_ffn2"],
        st["ln3_g"], st["ln3_b"],
    ]

    # per-batch activation blocks; per-layer weight blocks (full last two dims)
    act_spec = lambda a: pl.BlockSpec((1,) + a.shape[1:], lambda b, l: (b, 0, 0))
    w_spec = lambda a: pl.BlockSpec((1,) + a.shape[1:], lambda b, l: (l, 0, 0))

    in_specs = [act_spec(x), act_spec(enc), act_spec(mask)] + [w_spec(w) for w in weights]

    out = pl.pallas_call(
        functools.partial(_decoder_kernel, n_heads=n_heads, eps=1e-5),
        out_shape=jax.ShapeDtypeStruct((B, T, D), jnp.float32),
        grid=(B, L),
        in_specs=in_specs,
        out_specs=pl.BlockSpec((1, T, D), lambda b, l: (b, 0, 0)),
        scratch_shapes=[pltpu.VMEM((T, D), jnp.float32)],
        compiler_params=pltpu.CompilerParams(
            dimension_semantics=("parallel", "arbitrary")),
    )(x, enc, mask, *weights)
    return out


def context_knowledge_decoder_forward(params, input_tokens, encoder_state,
                                      incr_state=None, n_heads=2):
    """Mirror of ContextKnowledgeDecoder.forward."""
    encoder_output, encoder_mask, _, _, _ = encoder_state
    out = transformer_decoder(params, input_tokens, encoder_output, encoder_mask, n_heads)
    # TODO(synk): incremental decoding state (incr_state / KV cache) not implemented;
    # this is a full eval-time forward pass and returns None for the new state.
    return out, None


# -------------------------- deterministic parameter init --------------------------

def init_params(key, vocab, dim, ffn_dim, n_layers, max_pos=64):
    def nrm(k, shape, s=0.02):
        return jax.random.normal(k, shape, jnp.float32) * s

    keys = jax.random.split(key, 2 + n_layers)
    emb = nrm(keys[0], (vocab, dim))
    pos = nrm(keys[1], (max_pos, dim))

    layers = []
    for li in range(n_layers):
        lk = jax.random.split(keys[2 + li], 10)
        layers.append(dict(
            wqkv_self=jnp.concatenate(
                [nrm(lk[0], (dim, dim)), nrm(lk[1], (dim, dim)), nrm(lk[2], (dim, dim))],
                axis=1),
            bqkv_self=jnp.zeros((1, 3 * dim), jnp.float32),
            wo_self=nrm(lk[3], (dim, dim)),
            bo_self=jnp.zeros((1, dim), jnp.float32),
            ln1_g=jnp.ones((1, dim), jnp.float32), ln1_b=jnp.zeros((1, dim), jnp.float32),
            wq_cross=nrm(lk[4], (dim, dim)),
            bq_cross=jnp.zeros((1, dim), jnp.float32),
            wkv_cross=jnp.concatenate(
                [nrm(lk[5], (dim, dim)), nrm(lk[6], (dim, dim))], axis=1),
            bkv_cross=jnp.zeros((1, 2 * dim), jnp.float32),
            wo_cross=nrm(lk[7], (dim, dim)),
            bo_cross=jnp.zeros((1, dim), jnp.float32),
            ln2_g=jnp.ones((1, dim), jnp.float32), ln2_b=jnp.zeros((1, dim), jnp.float32),
            w_ffn1=nrm(lk[8], (dim, ffn_dim)),
            b_ffn1=jnp.zeros((1, ffn_dim), jnp.float32),
            w_ffn2=nrm(lk[9], (ffn_dim, dim)),
            b_ffn2=jnp.zeros((1, dim), jnp.float32),
            ln3_g=jnp.ones((1, dim), jnp.float32), ln3_b=jnp.zeros((1, dim), jnp.float32),
        ))

    # Stack per-layer params along a leading layer axis; matmul weights -> bf16 (MXU),
    # biases and layernorm params stay f32 (added after f32 accumulation).
    stacked = {}
    for name in layers[0]:
        arr = jnp.stack([lyr[name] for lyr in layers], axis=0)
        if name.startswith("w"):
            arr = arr.astype(jnp.bfloat16)
        stacked[name] = arr

    return {"embeddings": emb, "pos_embeddings": pos, "stacked": stacked}


# -------------------------- demo --------------------------

if __name__ == "__main__":
    B, T_DEC, T_ENC = 2, 8, 16
    VOCAB, DIM, HEADS, FFN, LAYERS = 64, 32, 2, 64, 2

    root = jax.random.PRNGKey(0)
    k_par, k_tok, k_enc = jax.random.split(root, 3)

    params = init_params(k_par, VOCAB, DIM, FFN, LAYERS)

    input_tokens = jax.random.randint(k_tok, (B, T_DEC), 0, VOCAB, dtype=jnp.int32)
    encoder_output = jax.random.normal(k_enc, (B, T_ENC, DIM), jnp.float32) * 0.5
    # encoder padding mask: 1 = real token, 0 = padding (second sequence padded at the end)
    encoder_mask = jnp.array(
        [[1] * T_ENC, [1] * (T_ENC - 4) + [0] * 4], dtype=jnp.bool_)

    # encoder_state mirrors ContextKnowledgeEncoder output:
    # (enc_out, enc_mask, ck_attn, cs_ids, know_use)
    encoder_state = (encoder_output, encoder_mask, None, None, None)

    out, new_incr_state = context_knowledge_decoder_forward(
        params, input_tokens, encoder_state, incr_state=None, n_heads=HEADS)
    out = jax.block_until_ready(out)

    assert out.shape == (B, T_DEC, DIM)
    assert bool(jnp.all(jnp.isfinite(out)))
    print("KERNEL_OK")
</pallas_src>

<mosaic_0001>
module attributes {stable_mosaic.version = 11 : i64} {
  func.func @_decoder_kernel(%arg0: i32, %arg1: i32, %arg2: memref<1x8x32xf32, #tpu.memory_space<vmem>>, %arg3: memref<1x16x32xbf16, #tpu.memory_space<vmem>>, %arg4: memref<1x1x16xf32, #tpu.memory_space<vmem>>, %arg5: memref<1x32x96xbf16, #tpu.memory_space<vmem>>, %arg6: memref<1x1x96xf32, #tpu.memory_space<vmem>>, %arg7: memref<1x32x32xbf16, #tpu.memory_space<vmem>>, %arg8: memref<1x1x32xf32, #tpu.memory_space<vmem>>, %arg9: memref<1x1x32xf32, #tpu.memory_space<vmem>>, %arg10: memref<1x1x32xf32, #tpu.memory_space<vmem>>, %arg11: memref<1x32x32xbf16, #tpu.memory_space<vmem>>, %arg12: memref<1x1x32xf32, #tpu.memory_space<vmem>>, %arg13: memref<1x32x64xbf16, #tpu.memory_space<vmem>>, %arg14: memref<1x1x64xf32, #tpu.memory_space<vmem>>, %arg15: memref<1x32x32xbf16, #tpu.memory_space<vmem>>, %arg16: memref<1x1x32xf32, #tpu.memory_space<vmem>>, %arg17: memref<1x1x32xf32, #tpu.memory_space<vmem>>, %arg18: memref<1x1x32xf32, #tpu.memory_space<vmem>>, %arg19: memref<1x32x64xbf16, #tpu.memory_space<vmem>>, %arg20: memref<1x1x64xf32, #tpu.memory_space<vmem>>, %arg21: memref<1x64x32xbf16, #tpu.memory_space<vmem>>, %arg22: memref<1x1x32xf32, #tpu.memory_space<vmem>>, %arg23: memref<1x1x32xf32, #tpu.memory_space<vmem>>, %arg24: memref<1x1x32xf32, #tpu.memory_space<vmem>>, %arg25: memref<1x8x32xf32, #tpu.memory_space<vmem>>, %arg26: memref<8x32xf32, #tpu.memory_space<vmem>>) attributes {dimension_semantics = [#tpu.dimension_semantics<parallel>, #tpu.dimension_semantics<arbitrary>], iteration_bounds = array<i64: 2, 2>, scalar_prefetch = 0 : i64, scratch_operands = 1 : i64, tpu.core_type = #tpu.core_type<tc>, window_params = [{transform_indices = @transform_0, window_bounds = array<i64: 1, 8, 32>}, {transform_indices = @transform_1, window_bounds = array<i64: 1, 16, 32>}, {transform_indices = @transform_2, window_bounds = array<i64: 1, 1, 16>}, {transform_indices = @transform_3, window_bounds = array<i64: 1, 32, 96>}, {transform_indices = @transform_4, window_bounds = array<i64: 1, 1, 96>}, {transform_indices = @transform_5, window_bounds = array<i64: 1, 32, 32>}, {transform_indices = @transform_6, window_bounds = array<i64: 1, 1, 32>}, {transform_indices = @transform_7, window_bounds = array<i64: 1, 1, 32>}, {transform_indices = @transform_8, window_bounds = array<i64: 1, 1, 32>}, {transform_indices = @transform_9, window_bounds = array<i64: 1, 32, 32>}, {transform_indices = @transform_10, window_bounds = array<i64: 1, 1, 32>}, {transform_indices = @transform_11, window_bounds = array<i64: 1, 32, 64>}, {transform_indices = @transform_12, window_bounds = array<i64: 1, 1, 64>}, {transform_indices = @transform_13, window_bounds = array<i64: 1, 32, 32>}, {transform_indices = @transform_14, window_bounds = array<i64: 1, 1, 32>}, {transform_indices = @transform_15, window_bounds = array<i64: 1, 1, 32>}, {transform_indices = @transform_16, window_bounds = array<i64: 1, 1, 32>}, {transform_indices = @transform_17, window_bounds = array<i64: 1, 32, 64>}, {transform_indices = @transform_18, window_bounds = array<i64: 1, 1, 64>}, {transform_indices = @transform_19, window_bounds = array<i64: 1, 64, 32>}, {transform_indices = @transform_20, window_bounds = array<i64: 1, 1, 32>}, {transform_indices = @transform_21, window_bounds = array<i64: 1, 1, 32>}, {transform_indices = @transform_22, window_bounds = array<i64: 1, 1, 32>}, {transform_indices = @transform_23, window_bounds = array<i64: 1, 8, 32>}]} {
    %c0_i32 = arith.constant 0 : i32
    %0 = arith.cmpi eq, %arg1, %c0_i32 : i32
    %1 = arith.extui %0 : i1 to i32
    %c0_i32_0 = arith.constant 0 : i32
    %2 = arith.cmpi ne, %1, %c0_i32_0 : i32
    scf.if %2 {
      %c0_118 = arith.constant 0 : index
      %c0_119 = arith.constant 0 : index
      %c0_120 = arith.constant 0 : index
      %258 = vector.load %arg2[%c0_118, %c0_119, %c0_120] : memref<1x8x32xf32, #tpu.memory_space<vmem>>, vector<1x8x32xf32>
      %259 = vector.shape_cast %258 : vector<1x8x32xf32> to vector<8x32xf32>
      %c0_121 = arith.constant 0 : index
      %c0_122 = arith.constant 0 : index
      %260 = vector.load %arg26[%c0_121, %c0_122] : memref<8x32xf32, #tpu.memory_space<vmem>>, vector<8x32xf32>
      tpu.vector_store %arg26[%c0_121, %c0_122], %259 {strides = array<i32>} : memref<8x32xf32, #tpu.memory_space<vmem>>, vector<8x32xf32>,
    } else {
    }
    %c0 = arith.constant 0 : index
    %c0_1 = arith.constant 0 : index
    %3 = vector.load %arg26[%c0, %c0_1] : memref<8x32xf32, #tpu.memory_space<vmem>>, vector<8x32xf32>
    %4 = arith.truncf %3 : vector<8x32xf32> to vector<8x32xbf16>
    %c0_2 = arith.constant 0 : index
    %c0_3 = arith.constant 0 : index
    %c0_4 = arith.constant 0 : index
    %5 = vector.load %arg5[%c0_2, %c0_3, %c0_4] : memref<1x32x96xbf16, #tpu.memory_space<vmem>>, vector<1x32x96xbf16>
    %6 = vector.shape_cast %5 : vector<1x32x96xbf16> to vector<32x96xbf16>
    %cst = arith.constant dense<0.000000e+00> : vector<8x96xf32>
    %7 = tpu.matmul %4, %6, %cst {dimension_numbers = #tpu.dot_dimension_numbers<[1], [0], [0], [1], [0, 0, 1, 1], [], []>} : vector<8x32xbf16>, vector<32x96xbf16>, vector<8x96xf32> -> vector<8x96xf32>
    %c0_5 = arith.constant 0 : index
    %c0_6 = arith.constant 0 : index
    %c0_7 = arith.constant 0 : index
    %8 = vector.load %arg6[%c0_5, %c0_6, %c0_7] : memref<1x1x96xf32, #tpu.memory_space<vmem>>, vector<1x1x96xf32>
    %9 = vector.shape_cast %8 : vector<1x1x96xf32> to vector<1x96xf32>
    %10 = vector.broadcast %9 : vector<1x96xf32> to vector<8x96xf32>
    %11 = arith.addf %7, %10 : vector<8x96xf32>
    %12 = vector.extract_strided_slice %11 {offsets = [0, 0], sizes = [8, 32], strides = [1, 1]} : vector<8x96xf32> to vector<8x32xf32>
    %13 = vector.extract_strided_slice %11 {offsets = [0, 32], sizes = [8, 32], strides = [1, 1]} : vector<8x96xf32> to vector<8x32xf32>
    %14 = vector.extract_strided_slice %11 {offsets = [0, 64], sizes = [8, 32], strides = [1, 1]} : vector<8x96xf32> to vector<8x32xf32>
    %15 = tpu.iota {dimensions = array<i32: 0>} : vector<8x8xi32>
    %16 = tpu.iota {dimensions = array<i32: 1>} : vector<8x8xi32>
    %17 = arith.cmpi sle, %16, %15 : vector<8x8xi32>
    %18 = vector.extract_strided_slice %12 {offsets = [0, 0], sizes = [8, 16], strides = [1, 1]} : vector<8x32xf32> to vector<8x16xf32>
    %19 = arith.truncf %18 : vector<8x16xf32> to vector<8x16xbf16>
    %20 = vector.extract_strided_slice %13 {offsets = [0, 0], sizes = [8, 16], strides = [1, 1]} : vector<8x32xf32> to vector<8x16xf32>
    %21 = arith.truncf %20 : vector<8x16xf32> to vector<8x16xbf16>
    %22 = vector.extract_strided_slice %14 {offsets = [0, 0], sizes = [8, 16], strides = [1, 1]} : vector<8x32xf32> to vector<8x16xf32>
    %23 = arith.truncf %22 : vector<8x16xf32> to vector<8x16xbf16>
    %cst_8 = arith.constant dense<0.000000e+00> : vector<8x8xf32>
    %24 = tpu.matmul %19, %21, %cst_8 {dimension_numbers = #tpu.dot_dimension_numbers<[1], [1], [0], [0], [0, 0, 1, 0], [], []>} : vector<8x16xbf16>, vector<8x16xbf16>, vector<8x8xf32> -> vector<8x8xf32>
    %cst_9 = arith.constant 2.500000e-01 : f32
    %25 = vector.broadcast %cst_9 : f32 to vector<8x8xf32>
    %26 = arith.mulf %24, %25 : vector<8x8xf32>
    %cst_10 = arith.constant -1.000000e+30 : f32
    %27 = vector.broadcast %cst_10 : f32 to vector<8x8xf32>
    %28 = arith.select %17, %26, %27 : vector<8x8xi1>, vector<8x8xf32>
    %cst_11 = arith.constant dense<0xFF800000> : vector<8xf32>
    %29 = vector.multi_reduction <maximumf>, %28, %cst_11 [1] : vector<8x8xf32> to vector<8xf32>
    %30 = vector.shape_cast %29 : vector<8xf32> to vector<8x1xf32>
    %31 = vector.broadcast %30 : vector<8x1xf32> to vector<8x8xf32>
    %32 = arith.subf %28, %31 : vector<8x8xf32>
    %33 = math.exp %32 : vector<8x8xf32>
    %cst_12 = arith.constant dense<0.000000e+00> : vector<8xf32>
    %34 = vector.multi_reduction <add>, %33, %cst_12 [1] : vector<8x8xf32> to vector<8xf32>
    %35 = vector.shape_cast %34 : vector<8xf32> to vector<8x1xf32>
    %36 = tpu.reciprocal %35 {approx = true} : vector<8x1xf32> -> vector<8x1xf32>
    %37 = vector.broadcast %36 : vector<8x1xf32> to vector<8x8xf32>
    %38 = arith.mulf %33, %37 : vector<8x8xf32>
    %39 = arith.truncf %38 : vector<8x8xf32> to vector<8x8xbf16>
    %cst_13 = arith.constant dense<0.000000e+00> : vector<8x16xf32>
    %40 = tpu.matmul %39, %23, %cst_13 {dimension_numbers = #tpu.dot_dimension_numbers<[1], [0], [0], [1], [0, 0, 1, 1], [], []>} : vector<8x8xbf16>, vector<8x16xbf16>, vector<8x16xf32> -> vector<8x16xf32>
    %41 = vector.extract_strided_slice %12 {offsets = [0, 16], sizes = [8, 16], strides = [1, 1]} : vector<8x32xf32> to vector<8x16xf32>
    %42 = arith.truncf %41 : vector<8x16xf32> to vector<8x16xbf16>
    %43 = vector.extract_strided_slice %13 {offsets = [0, 16], sizes = [8, 16], strides = [1, 1]} : vector<8x32xf32> to vector<8x16xf32>
    %44 = arith.truncf %43 : vector<8x16xf32> to vector<8x16xbf16>
    %45 = vector.extract_strided_slice %14 {offsets = [0, 16], sizes = [8, 16], strides = [1, 1]} : vector<8x32xf32> to vector<8x16xf32>
    %46 = arith.truncf %45 : vector<8x16xf32> to vector<8x16xbf16>
    %cst_14 = arith.constant dense<0.000000e+00> : vector<8x8xf32>
    %47 = tpu.matmul %42, %44, %cst_14 {dimension_numbers = #tpu.dot_dimension_numbers<[1], [1], [0], [0], [0, 0, 1, 0], [], []>} : vector<8x16xbf16>, vector<8x16xbf16>, vector<8x8xf32> -> vector<8x8xf32>
    %cst_15 = arith.constant 2.500000e-01 : f32
    %48 = vector.broadcast %cst_15 : f32 to vector<8x8xf32>
    %49 = arith.mulf %47, %48 : vector<8x8xf32>
    %cst_16 = arith.constant -1.000000e+30 : f32
    %50 = vector.broadcast %cst_16 : f32 to vector<8x8xf32>
    %51 = arith.select %17, %49, %50 : vector<8x8xi1>, vector<8x8xf32>
    %cst_17 = arith.constant dense<0xFF800000> : vector<8xf32>
    %52 = vector.multi_reduction <maximumf>, %51, %cst_17 [1] : vector<8x8xf32> to vector<8xf32>
    %53 = vector.shape_cast %52 : vector<8xf32> to vector<8x1xf32>
    %54 = vector.broadcast %53 : vector<8x1xf32> to vector<8x8xf32>
    %55 = arith.subf %51, %54 : vector<8x8xf32>
    %56 = math.exp %55 : vector<8x8xf32>
    %cst_18 = arith.constant dense<0.000000e+00> : vector<8xf32>
    %57 = vector.multi_reduction <add>, %56, %cst_18 [1] : vector<8x8xf32> to vector<8xf32>
    %58 = vector.shape_cast %57 : vector<8xf32> to vector<8x1xf32>
    %59 = tpu.reciprocal %58 {approx = true} : vector<8x1xf32> -> vector<8x1xf32>
    %60 = vector.broadcast %59 : vector<8x1xf32> to vector<8x8xf32>
    %61 = arith.mulf %56, %60 : vector<8x8xf32>
    %62 = arith.truncf %61 : vector<8x8xf32> to vector<8x8xbf16>
    %cst_19 = arith.constant dense<0.000000e+00> : vector<8x16xf32>
    %63 = tpu.matmul %62, %46, %cst_19 {dimension_numbers = #tpu.dot_dimension_numbers<[1], [0], [0], [1], [0, 0, 1, 1], [], []>} : vector<8x8xbf16>, vector<8x16xbf16>, vector<8x16xf32> -> vector<8x16xf32>
    %64 = tpu.concatenate %40, %63 in 1 : vector<8x16xf32>, vector<8x16xf32> -> vector<8x32xf32>
    %65 = arith.truncf %64 : vector<8x32xf32> to vector<8x32xbf16>
    %c0_20 = arith.constant 0 : index
    %c0_21 = arith.constant 0 : index
    %c0_22 = arith.constant 0 : index
    %66 = vector.load %arg7[%c0_20, %c0_21, %c0_22] : memref<1x32x32xbf16, #tpu.memory_space<vmem>>, vector<1x32x32xbf16>
    %67 = vector.shape_cast %66 : vector<1x32x32xbf16> to vector<32x32xbf16>
    %cst_23 = arith.constant dense<0.000000e+00> : vector<8x32xf32>
    %68 = tpu.matmul %65, %67, %cst_23 {dimension_numbers = #tpu.dot_dimension_numbers<[1], [0], [0], [1], [0, 0, 1, 1], [], []>} : vector<8x32xbf16>, vector<32x32xbf16>, vector<8x32xf32> -> vector<8x32xf32>
    %c0_24 = arith.constant 0 : index
    %c0_25 = arith.constant 0 : index
    %c0_26 = arith.constant 0 : index
    %69 = vector.load %arg8[%c0_24, %c0_25, %c0_26] : memref<1x1x32xf32, #tpu.memory_space<vmem>>, vector<1x1x32xf32>
    %70 = vector.shape_cast %69 : vector<1x1x32xf32> to vector<1x32xf32>
    %71 = vector.broadcast %70 : vector<1x32xf32> to vector<8x32xf32>
    %72 = arith.addf %68, %71 : vector<8x32xf32>
    %73 = arith.addf %3, %72 : vector<8x32xf32>
    %c0_27 = arith.constant 0 : index
    %c0_28 = arith.constant 0 : index
    %c0_29 = arith.constant 0 : index
    %74 = vector.load %arg9[%c0_27, %c0_28, %c0_29] : memref<1x1x32xf32, #tpu.memory_space<vmem>>, vector<1x1x32xf32>
    %75 = vector.shape_cast %74 : vector<1x1x32xf32> to vector<1x32xf32>
    %c0_30 = arith.constant 0 : index
    %c0_31 = arith.constant 0 : index
    %c0_32 = arith.constant 0 : index
    %76 = vector.load %arg10[%c0_30, %c0_31, %c0_32] : memref<1x1x32xf32, #tpu.memory_space<vmem>>, vector<1x1x32xf32>
    %77 = vector.shape_cast %76 : vector<1x1x32xf32> to vector<1x32xf32>
    %cst_33 = arith.constant dense<0.000000e+00> : vector<8xf32>
    %78 = vector.multi_reduction <add>, %73, %cst_33 [1] : vector<8x32xf32> to vector<8xf32>
    %79 = vector.shape_cast %78 : vector<8xf32> to vector<8x1xf32>
    %cst_34 = arith.constant 3.200000e+01 : f32
    %80 = vector.broadcast %cst_34 : f32 to vector<8x1xf32>
    %81 = arith.divf %79, %80 : vector<8x1xf32>
    %82 = vector.broadcast %81 : vector<8x1xf32> to vector<8x32xf32>
    %83 = arith.subf %73, %82 : vector<8x32xf32>
    %84 = arith.mulf %83, %83 : vector<8x32xf32>
    %cst_35 = arith.constant dense<0.000000e+00> : vector<8xf32>
    %85 = vector.multi_reduction <add>, %84, %cst_35 [1] : vector<8x32xf32> to vector<8xf32>
    %86 = vector.shape_cast %85 : vector<8xf32> to vector<8x1xf32>
    %cst_36 = arith.constant 3.200000e+01 : f32
    %87 = vector.broadcast %cst_36 : f32 to vector<8x1xf32>
    %88 = arith.divf %86, %87 : vector<8x1xf32>
    %89 = vector.broadcast %81 : vector<8x1xf32> to vector<8x32xf32>
    %90 = arith.subf %73, %89 : vector<8x32xf32>
    %cst_37 = arith.constant 9.99999974E-6 : f32
    %91 = vector.broadcast %cst_37 : f32 to vector<8x1xf32>
    %92 = arith.addf %88, %91 : vector<8x1xf32>
    %93 = math.rsqrt %92 : vector<8x1xf32>
    %94 = vector.broadcast %93 : vector<8x1xf32> to vector<8x32xf32>
    %95 = arith.mulf %90, %94 : vector<8x32xf32>
    %96 = vector.broadcast %75 : vector<1x32xf32> to vector<8x32xf32>
    %97 = arith.mulf %95, %96 : vector<8x32xf32>
    %98 = vector.broadcast %77 : vector<1x32xf32> to vector<8x32xf32>
    %99 = arith.addf %97, %98 : vector<8x32xf32>
    %c0_38 = arith.constant 0 : index
    %c0_39 = arith.constant 0 : index
    %c0_40 = arith.constant 0 : index
    %100 = vector.load %arg3[%c0_38, %c0_39, %c0_40] : memref<1x16x32xbf16, #tpu.memory_space<vmem>>, vector<1x16x32xbf16>
    %101 = vector.shape_cast %100 : vector<1x16x32xbf16> to vector<16x32xbf16>
    %102 = arith.truncf %99 : vector<8x32xf32> to vector<8x32xbf16>
    %c0_41 = arith.constant 0 : index
    %c0_42 = arith.constant 0 : index
    %c0_43 = arith.constant 0 : index
    %103 = vector.load %arg11[%c0_41, %c0_42, %c0_43] : memref<1x32x32xbf16, #tpu.memory_space<vmem>>, vector<1x32x32xbf16>
    %104 = vector.shape_cast %103 : vector<1x32x32xbf16> to vector<32x32xbf16>
    %cst_44 = arith.constant dense<0.000000e+00> : vector<8x32xf32>
    %105 = tpu.matmul %102, %104, %cst_44 {dimension_numbers = #tpu.dot_dimension_numbers<[1], [0], [0], [1], [0, 0, 1, 1], [], []>} : vector<8x32xbf16>, vector<32x32xbf16>, vector<8x32xf32> -> vector<8x32xf32>
    %c0_45 = arith.constant 0 : index
    %c0_46 = arith.constant 0 : index
    %c0_47 = arith.constant 0 : index
    %106 = vector.load %arg12[%c0_45, %c0_46, %c0_47] : memref<1x1x32xf32, #tpu.memory_space<vmem>>, vector<1x1x32xf32>
    %107 = vector.shape_cast %106 : vector<1x1x32xf32> to vector<1x32xf32>
    %108 = vector.broadcast %107 : vector<1x32xf32> to vector<8x32xf32>
    %109 = arith.addf %105, %108 : vector<8x32xf32>
    %c0_48 = arith.constant 0 : index
    %c0_49 = arith.constant 0 : index
    %c0_50 = arith.constant 0 : index
    %110 = vector.load %arg13[%c0_48, %c0_49, %c0_50] : memref<1x32x64xbf16, #tpu.memory_space<vmem>>, vector<1x32x64xbf16>
    %111 = vector.shape_cast %110 : vector<1x32x64xbf16> to vector<32x64xbf16>
    %cst_51 = arith.constant dense<0.000000e+00> : vector<16x64xf32>
    %112 = tpu.matmul %101, %111, %cst_51 {dimension_numbers = #tpu.dot_dimension_numbers<[1], [0], [0], [1], [0, 0, 1, 1], [], []>} : vector<16x32xbf16>, vector<32x64xbf16>, vector<16x64xf32> -> vector<16x64xf32>
    %c0_52 = arith.constant 0 : index
    %c0_53 = arith.constant 0 : index
    %c0_54 = arith.constant 0 : index
    %113 = vector.load %arg14[%c0_52, %c0_53, %c0_54] : memref<1x1x64xf32, #tpu.memory_space<vmem>>, vector<1x1x64xf32>
    %114 = vector.shape_cast %113 : vector<1x1x64xf32> to vector<1x64xf32>
    %115 = vector.broadcast %114 : vector<1x64xf32> to vector<16x64xf32>
    %116 = arith.addf %112, %115 : vector<16x64xf32>
    %117 = vector.extract_strided_slice %116 {offsets = [0, 0], sizes = [16, 32], strides = [1, 1]} : vector<16x64xf32> to vector<16x32xf32>
    %118 = vector.extract_strided_slice %116 {offsets = [0, 32], sizes = [16, 32], strides = [1, 1]} : vector<16x64xf32> to vector<16x32xf32>
    %c0_55 = arith.constant 0 : index
    %c0_56 = arith.constant 0 : index
    %c0_57 = arith.constant 0 : index
    %119 = vector.load %arg4[%c0_55, %c0_56, %c0_57] : memref<1x1x16xf32, #tpu.memory_space<vmem>>, vector<1x1x16xf32>
    %120 = vector.shape_cast %119 : vector<1x1x16xf32> to vector<1x16xf32>
    %cst_58 = arith.constant 0.000000e+00 : f32
    %121 = vector.broadcast %cst_58 : f32 to vector<1x16xf32>
    %122 = arith.cmpf ogt, %120, %121 : vector<1x16xf32>
    %123 = vector.extract_strided_slice %109 {offsets = [0, 0], sizes = [8, 16], strides = [1, 1]} : vector<8x32xf32> to vector<8x16xf32>
    %124 = arith.truncf %123 : vector<8x16xf32> to vector<8x16xbf16>
    %125 = vector.extract_strided_slice %117 {offsets = [0, 0], sizes = [16, 16], strides = [1, 1]} : vector<16x32xf32> to vector<16x16xf32>
    %126 = arith.truncf %125 : vector<16x16xf32> to vector<16x16xbf16>
    %127 = vector.extract_strided_slice %118 {offsets = [0, 0], sizes = [16, 16], strides = [1, 1]} : vector<16x32xf32> to vector<16x16xf32>
    %128 = arith.truncf %127 : vector<16x16xf32> to vector<16x16xbf16>
    %cst_59 = arith.constant dense<0.000000e+00> : vector<8x16xf32>
    %129 = tpu.matmul %124, %126, %cst_59 {dimension_numbers = #tpu.dot_dimension_numbers<[1], [1], [0], [0], [0, 0, 1, 0], [], []>} : vector<8x16xbf16>, vector<16x16xbf16>, vector<8x16xf32> -> vector<8x16xf32>
    %cst_60 = arith.constant 2.500000e-01 : f32
    %130 = vector.broadcast %cst_60 : f32 to vector<8x16xf32>
    %131 = arith.mulf %129, %130 : vector<8x16xf32>
    %cst_61 = arith.constant -1.000000e+30 : f32
    %132 = vector.shape_cast %122 : vector<1x16xi1> to vector<1x16xi1>
    %133 = vector.broadcast %132 : vector<1x16xi1> to vector<8x16xi1>
    %134 = vector.broadcast %cst_61 : f32 to vector<8x16xf32>
    %135 = arith.select %133, %131, %134 : vector<8x16xi1>, vector<8x16xf32>
    %cst_62 = arith.constant dense<0xFF800000> : vector<8xf32>
    %136 = vector.multi_reduction <maximumf>, %135, %cst_62 [1] : vector<8x16xf32> to vector<8xf32>
    %137 = vector.shape_cast %136 : vector<8xf32> to vector<8x1xf32>
    %138 = vector.broadcast %137 : vector<8x1xf32> to vector<8x16xf32>
    %139 = arith.subf %135, %138 : vector<8x16xf32>
    %140 = math.exp %139 : vector<8x16xf32>
    %cst_63 = arith.constant dense<0.000000e+00> : vector<8xf32>
    %141 = vector.multi_reduction <add>, %140, %cst_63 [1] : vector<8x16xf32> to vector<8xf32>
    %142 = vector.shape_cast %141 : vector<8xf32> to vector<8x1xf32>
    %143 = tpu.reciprocal %142 {approx = true} : vector<8x1xf32> -> vector<8x1xf32>
    %144 = vector.broadcast %143 : vector<8x1xf32> to vector<8x16xf32>
    %145 = arith.mulf %140, %144 : vector<8x16xf32>
    %146 = arith.truncf %145 : vector<8x16xf32> to vector<8x16xbf16>
    %cst_64 = arith.constant dense<0.000000e+00> : vector<8x16xf32>
    %147 = tpu.matmul %146, %128, %cst_64 {dimension_numbers = #tpu.dot_dimension_numbers<[1], [0], [0], [1], [0, 0, 1, 1], [], []>} : vector<8x16xbf16>, vector<16x16xbf16>, vector<8x16xf32> -> vector<8x16xf32>
    %148 = vector.extract_strided_slice %109 {offsets = [0, 16], sizes = [8, 16], strides = [1, 1]} : vector<8x32xf32> to vector<8x16xf32>
    %149 = arith.truncf %148 : vector<8x16xf32> to vector<8x16xbf16>
    %150 = vector.extract_strided_slice %117 {offsets = [0, 16], sizes = [16, 16], strides = [1, 1]} : vector<16x32xf32> to vector<16x16xf32>
    %151 = arith.truncf %150 : vector<16x16xf32> to vector<16x16xbf16>
    %152 = vector.extract_strided_slice %118 {offsets = [0, 16], sizes = [16, 16], strides = [1, 1]} : vector<16x32xf32> to vector<16x16xf32>
    %153 = arith.truncf %152 : vector<16x16xf32> to vector<16x16xbf16>
    %cst_65 = arith.constant dense<0.000000e+00> : vector<8x16xf32>
    %154 = tpu.matmul %149, %151, %cst_65 {dimension_numbers = #tpu.dot_dimension_numbers<[1], [1], [0], [0], [0, 0, 1, 0], [], []>} : vector<8x16xbf16>, vector<16x16xbf16>, vector<8x16xf32> -> vector<8x16xf32>
    %cst_66 = arith.constant 2.500000e-01 : f32
    %155 = vector.broadcast %cst_66 : f32 to vector<8x16xf32>
    %156 = arith.mulf %154, %155 : vector<8x16xf32>
    %cst_67 = arith.constant -1.000000e+30 : f32
    %157 = vector.shape_cast %122 : vector<1x16xi1> to vector<1x16xi1>
    %158 = vector.broadcast %157 : vector<1x16xi1> to vector<8x16xi1>
    %159 = vector.broadcast %cst_67 : f32 to vector<8x16xf32>
    %160 = arith.select %158, %156, %159 : vector<8x16xi1>, vector<8x16xf32>
    %cst_68 = arith.constant dense<0xFF800000> : vector<8xf32>
    %161 = vector.multi_reduction <maximumf>, %160, %cst_68 [1] : vector<8x16xf32> to vector<8xf32>
    %162 = vector.shape_cast %161 : vector<8xf32> to vector<8x1xf32>
    %163 = vector.broadcast %162 : vector<8x1xf32> to vector<8x16xf32>
    %164 = arith.subf %160, %163 : vector<8x16xf32>
    %165 = math.exp %164 : vector<8x16xf32>
    %cst_69 = arith.constant dense<0.000000e+00> : vector<8xf32>
    %166 = vector.multi_reduction <add>, %165, %cst_69 [1] : vector<8x16xf32> to vector<8xf32>
    %167 = vector.shape_cast %166 : vector<8xf32> to vector<8x1xf32>
    %168 = tpu.reciprocal %167 {approx = true} : vector<8x1xf32> -> vector<8x1xf32>
    %169 = vector.broadcast %168 : vector<8x1xf32> to vector<8x16xf32>
    %170 = arith.mulf %165, %169 : vector<8x16xf32>
    %171 = arith.truncf %170 : vector<8x16xf32> to vector<8x16xbf16>
    %cst_70 = arith.constant dense<0.000000e+00> : vector<8x16xf32>
    %172 = tpu.matmul %171, %153, %cst_70 {dimension_numbers = #tpu.dot_dimension_numbers<[1], [0], [0], [1], [0, 0, 1, 1], [], []>} : vector<8x16xbf16>, vector<16x16xbf16>, vector<8x16xf32> -> vector<8x16xf32>
    %173 = tpu.concatenate %147, %172 in 1 : vector<8x16xf32>, vector<8x16xf32> -> vector<8x32xf32>
    %174 = arith.truncf %173 : vector<8x32xf32> to vector<8x32xbf16>
    %c0_71 = arith.constant 0 : index
    %c0_72 = arith.constant 0 : index
    %c0_73 = arith.constant 0 : index
    %175 = vector.load %arg15[%c0_71, %c0_72, %c0_73] : memref<1x32x32xbf16, #tpu.memory_space<vmem>>, vector<1x32x32xbf16>
    %176 = vector.shape_cast %175 : vector<1x32x32xbf16> to vector<32x32xbf16>
    %cst_74 = arith.constant dense<0.000000e+00> : vector<8x32xf32>
    %177 = tpu.matmul %174, %176, %cst_74 {dimension_numbers = #tpu.dot_dimension_numbers<[1], [0], [0], [1], [0, 0, 1, 1], [], []>} : vector<8x32xbf16>, vector<32x32xbf16>, vector<8x32xf32> -> vector<8x32xf32>
    %c0_75 = arith.constant 0 : index
    %c0_76 = arith.constant 0 : index
    %c0_77 = arith.constant 0 : index
    %178 = vector.load %arg16[%c0_75, %c0_76, %c0_77] : memref<1x1x32xf32, #tpu.memory_space<vmem>>, vector<1x1x32xf32>
    %179 = vector.shape_cast %178 : vector<1x1x32xf32> to vector<1x32xf32>
    %180 = vector.broadcast %179 : vector<1x32xf32> to vector<8x32xf32>
    %181 = arith.addf %177, %180 : vector<8x32xf32>
    %182 = arith.addf %99, %181 : vector<8x32xf32>
    %c0_78 = arith.constant 0 : index
    %c0_79 = arith.constant 0 : index
    %c0_80 = arith.constant 0 : index
    %183 = vector.load %arg17[%c0_78, %c0_79, %c0_80] : memref<1x1x32xf32, #tpu.memory_space<vmem>>, vector<1x1x32xf32>
    %184 = vector.shape_cast %183 : vector<1x1x32xf32> to vector<1x32xf32>
    %c0_81 = arith.constant 0 : index
    %c0_82 = arith.constant 0 : index
    %c0_83 = arith.constant 0 : index
    %185 = vector.load %arg18[%c0_81, %c0_82, %c0_83] : memref<1x1x32xf32, #tpu.memory_space<vmem>>, vector<1x1x32xf32>
    %186 = vector.shape_cast %185 : vector<1x1x32xf32> to vector<1x32xf32>
    %cst_84 = arith.constant dense<0.000000e+00> : vector<8xf32>
    %187 = vector.multi_reduction <add>, %182, %cst_84 [1] : vector<8x32xf32> to vector<8xf32>
    %188 = vector.shape_cast %187 : vector<8xf32> to vector<8x1xf32>
    %cst_85 = arith.constant 3.200000e+01 : f32
    %189 = vector.broadcast %cst_85 : f32 to vector<8x1xf32>
    %190 = arith.divf %188, %189 : vector<8x1xf32>
    %191 = vector.broadcast %190 : vector<8x1xf32> to vector<8x32xf32>
    %192 = arith.subf %182, %191 : vector<8x32xf32>
    %193 = arith.mulf %192, %192 : vector<8x32xf32>
    %cst_86 = arith.constant dense<0.000000e+00> : vector<8xf32>
    %194 = vector.multi_reduction <add>, %193, %cst_86 [1] : vector<8x32xf32> to vector<8xf32>
    %195 = vector.shape_cast %194 : vector<8xf32> to vector<8x1xf32>
    %cst_87 = arith.constant 3.200000e+01 : f32
    %196 = vector.broadcast %cst_87 : f32 to vector<8x1xf32>
    %197 = arith.divf %195, %196 : vector<8x1xf32>
    %198 = vector.broadcast %190 : vector<8x1xf32> to vector<8x32xf32>
    %199 = arith.subf %182, %198 : vector<8x32xf32>
    %cst_88 = arith.constant 9.99999974E-6 : f32
    %200 = vector.broadcast %cst_88 : f32 to vector<8x1xf32>
    %201 = arith.addf %197, %200 : vector<8x1xf32>
    %202 = math.rsqrt %201 : vector<8x1xf32>
    %203 = vector.broadcast %202 : vector<8x1xf32> to vector<8x32xf32>
    %204 = arith.mulf %199, %203 : vector<8x32xf32>
    %205 = vector.broadcast %184 : vector<1x32xf32> to vector<8x32xf32>
    %206 = arith.mulf %204, %205 : vector<8x32xf32>
    %207 = vector.broadcast %186 : vector<1x32xf32> to vector<8x32xf32>
    %208 = arith.addf %206, %207 : vector<8x32xf32>
    %209 = arith.truncf %208 : vector<8x32xf32> to vector<8x32xbf16>
    %c0_89 = arith.constant 0 : index
    %c0_90 = arith.constant 0 : index
    %c0_91 = arith.constant 0 : index
    %210 = vector.load %arg19[%c0_89, %c0_90, %c0_91] : memref<1x32x64xbf16, #tpu.memory_space<vmem>>, vector<1x32x64xbf16>
    %211 = vector.shape_cast %210 : vector<1x32x64xbf16> to vector<32x64xbf16>
    %cst_92 = arith.constant dense<0.000000e+00> : vector<8x64xf32>
    %212 = tpu.matmul %209, %211, %cst_92 {dimension_numbers = #tpu.dot_dimension_numbers<[1], [0], [0], [1], [0, 0, 1, 1], [], []>} : vector<8x32xbf16>, vector<32x64xbf16>, vector<8x64xf32> -> vector<8x64xf32>
    %c0_93 = arith.constant 0 : index
    %c0_94 = arith.constant 0 : index
    %c0_95 = arith.constant 0 : index
    %213 = vector.load %arg20[%c0_93, %c0_94, %c0_95] : memref<1x1x64xf32, #tpu.memory_space<vmem>>, vector<1x1x64xf32>
    %214 = vector.shape_cast %213 : vector<1x1x64xf32> to vector<1x64xf32>
    %215 = vector.broadcast %214 : vector<1x64xf32> to vector<8x64xf32>
    %216 = arith.addf %212, %215 : vector<8x64xf32>
    %cst_96 = arith.constant 0.000000e+00 : f32
    %217 = vector.broadcast %cst_96 : f32 to vector<8x64xf32>
    %218 = arith.maximumf %216, %217 : vector<8x64xf32>
    %219 = arith.truncf %218 : vector<8x64xf32> to vector<8x64xbf16>
    %c0_97 = arith.constant 0 : index
    %c0_98 = arith.constant 0 : index
    %c0_99 = arith.constant 0 : index
    %220 = vector.load %arg21[%c0_97, %c0_98, %c0_99] : memref<1x64x32xbf16, #tpu.memory_space<vmem>>, vector<1x64x32xbf16>
    %221 = vector.shape_cast %220 : vector<1x64x32xbf16> to vector<64x32xbf16>
    %cst_100 = arith.constant dense<0.000000e+00> : vector<8x32xf32>
    %222 = tpu.matmul %219, %221, %cst_100 {dimension_numbers = #tpu.dot_dimension_numbers<[1], [0], [0], [1], [0, 0, 1, 1], [], []>} : vector<8x64xbf16>, vector<64x32xbf16>, vector<8x32xf32> -> vector<8x32xf32>
    %c0_101 = arith.constant 0 : index
    %c0_102 = arith.constant 0 : index
    %c0_103 = arith.constant 0 : index
    %223 = vector.load %arg22[%c0_101, %c0_102, %c0_103] : memref<1x1x32xf32, #tpu.memory_space<vmem>>, vector<1x1x32xf32>
    %224 = vector.shape_cast %223 : vector<1x1x32xf32> to vector<1x32xf32>
    %225 = vector.broadcast %224 : vector<1x32xf32> to vector<8x32xf32>
    %226 = arith.addf %222, %225 : vector<8x32xf32>
    %227 = arith.addf %208, %226 : vector<8x32xf32>
    %c0_104 = arith.constant 0 : index
    %c0_105 = arith.constant 0 : index
    %c0_106 = arith.constant 0 : index
    %228 = vector.load %arg23[%c0_104, %c0_105, %c0_106] : memref<1x1x32xf32, #tpu.memory_space<vmem>>, vector<1x1x32xf32>
    %229 = vector.shape_cast %228 : vector<1x1x32xf32> to vector<1x32xf32>
    %c0_107 = arith.constant 0 : index
    %c0_108 = arith.constant 0 : index
    %c0_109 = arith.constant 0 : index
    %230 = vector.load %arg24[%c0_107, %c0_108, %c0_109] : memref<1x1x32xf32, #tpu.memory_space<vmem>>, vector<1x1x32xf32>
    %231 = vector.shape_cast %230 : vector<1x1x32xf32> to vector<1x32xf32>
    %cst_110 = arith.constant dense<0.000000e+00> : vector<8xf32>
    %232 = vector.multi_reduction <add>, %227, %cst_110 [1] : vector<8x32xf32> to vector<8xf32>
    %233 = vector.shape_cast %232 : vector<8xf32> to vector<8x1xf32>
    %cst_111 = arith.constant 3.200000e+01 : f32
    %234 = vector.broadcast %cst_111 : f32 to vector<8x1xf32>
    %235 = arith.divf %233, %234 : vector<8x1xf32>
    %236 = vector.broadcast %235 : vector<8x1xf32> to vector<8x32xf32>
    %237 = arith.subf %227, %236 : vector<8x32xf32>
    %238 = arith.mulf %237, %237 : vector<8x32xf32>
    %cst_112 = arith.constant dense<0.000000e+00> : vector<8xf32>
    %239 = vector.multi_reduction <add>, %238, %cst_112 [1] : vector<8x32xf32> to vector<8xf32>
    %240 = vector.shape_cast %239 : vector<8xf32> to vector<8x1xf32>
    %cst_113 = arith.constant 3.200000e+01 : f32
    %241 = vector.broadcast %cst_113 : f32 to vector<8x1xf32>
    %242 = arith.divf %240, %241 : vector<8x1xf32>
    %243 = vector.broadcast %235 : vector<8x1xf32> to vector<8x32xf32>
    %244 = arith.subf %227, %243 : vector<8x32xf32>
    %cst_114 = arith.constant 9.99999974E-6 : f32
    %245 = vector.broadcast %cst_114 : f32 to vector<8x1xf32>
    %246 = arith.addf %242, %245 : vector<8x1xf32>
    %247 = math.rsqrt %246 : vector<8x1xf32>
    %248 = vector.broadcast %247 : vector<8x1xf32> to vector<8x32xf32>
    %249 = arith.mulf %244, %248 : vector<8x32xf32>
    %250 = vector.broadcast %229 : vector<1x32xf32> to vector<8x32xf32>
    %251 = arith.mulf %249, %250 : vector<8x32xf32>
    %252 = vector.broadcast %231 : vector<1x32xf32> to vector<8x32xf32>
    %253 = arith.addf %251, %252 : vector<8x32xf32>
    %c0_115 = arith.constant 0 : index
    %c0_116 = arith.constant 0 : index
    %254 = vector.load %arg26[%c0_115, %c0_116] : memref<8x32xf32, #tpu.memory_space<vmem>>, vector<8x32xf32>
    tpu.vector_store %arg26[%c0_115, %c0_116], %253 {strides = array<i32>} : memref<8x32xf32, #tpu.memory_space<vmem>>, vector<8x32xf32>,
    %c1_i32 = arith.constant 1 : i32
    %255 = arith.cmpi eq, %arg1, %c1_i32 : i32
    %256 = arith.extui %255 : i1 to i32
    %c0_i32_117 = arith.constant 0 : i32
    %257 = arith.cmpi ne, %256, %c0_i32_117 : i32
    scf.if %257 {
      %c0_118 = arith.constant 0 : index
      %c0_119 = arith.constant 0 : index
      %c0_120 = arith.constant 0 : index
      %258 = vector.load %arg25[%c0_118, %c0_119, %c0_120] : memref<1x8x32xf32, #tpu.memory_space<vmem>>, vector<1x8x32xf32>
      %259 = vector.shape_cast %258 : vector<1x8x32xf32> to vector<8x32xf32>
      %260 = vector.shape_cast %253 : vector<8x32xf32> to vector<1x8x32xf32>
      tpu.vector_store %arg25[%c0_118, %c0_119, %c0_120], %260 {strides = array<i32>} : memref<1x8x32xf32, #tpu.memory_space<vmem>>, vector<1x8x32xf32>,
    } else {
    }
    return
  }
  func.func @transform_0(%arg0: i32, %arg1: i32) -> (i32, i32, i32) {
    %c0_i32 = arith.constant 0 : i32
    %c0_i32_0 = arith.constant 0 : i32
    %c0_i32_1 = arith.constant 0 : i32
    return %arg0, %c0_i32, %c0_i32_0 : i32, i32, i32
  }
  func.func @transform_1(%arg0: i32, %arg1: i32) -> (i32, i32, i32) {
    %c0_i32 = arith.constant 0 : i32
    %c0_i32_0 = arith.constant 0 : i32
    %c0_i32_1 = arith.constant 0 : i32
    return %arg0, %c0_i32, %c0_i32_0 : i32, i32, i32
  }
  func.func @transform_2(%arg0: i32, %arg1: i32) -> (i32, i32, i32) {
    %c0_i32 = arith.constant 0 : i32
    %c0_i32_0 = arith.constant 0 : i32
    %c0_i32_1 = arith.constant 0 : i32
    return %arg0, %c0_i32, %c0_i32_0 : i32, i32, i32
  }
  func.func @transform_3(%arg0: i32, %arg1: i32) -> (i32, i32, i32) {
    %c0_i32 = arith.constant 0 : i32
    %c0_i32_0 = arith.constant 0 : i32
    %c0_i32_1 = arith.constant 0 : i32
    return %arg1, %c0_i32, %c0_i32_0 : i32, i32, i32
  }
  func.func @transform_4(%arg0: i32, %arg1: i32) -> (i32, i32, i32) {
    %c0_i32 = arith.constant 0 : i32
    %c0_i32_0 = arith.constant 0 : i32
    %c0_i32_1 = arith.constant 0 : i32
    return %arg1, %c0_i32, %c0_i32_0 : i32, i32, i32
  }
  func.func @transform_5(%arg0: i32, %arg1: i32) -> (i32, i32, i32) {
    %c0_i32 = arith.constant 0 : i32
    %c0_i32_0 = arith.constant 0 : i32
    %c0_i32_1 = arith.constant 0 : i32
    return %arg1, %c0_i32, %c0_i32_0 : i32, i32, i32
  }
  func.func @transform_6(%arg0: i32, %arg1: i32) -> (i32, i32, i32) {
    %c0_i32 = arith.constant 0 : i32
    %c0_i32_0 = arith.constant 0 : i32
    %c0_i32_1 = arith.constant 0 : i32
    return %arg1, %c0_i32, %c0_i32_0 : i32, i32, i32
  }
  func.func @transform_7(%arg0: i32, %arg1: i32) -> (i32, i32, i32) {
    %c0_i32 = arith.constant 0 : i32
    %c0_i32_0 = arith.constant 0 : i32
    %c0_i32_1 = arith.constant 0 : i32
    return %arg1, %c0_i32, %c0_i32_0 : i32, i32, i32
  }
  func.func @transform_8(%arg0: i32, %arg1: i32) -> (i32, i32, i32) {
    %c0_i32 = arith.constant 0 : i32
    %c0_i32_0 = arith.constant 0 : i32
    %c0_i32_1 = arith.constant 0 : i32
    return %arg1, %c0_i32, %c0_i32_0 : i32, i32, i32
  }
  func.func @transform_9(%arg0: i32, %arg1: i32) -> (i32, i32, i32) {
    %c0_i32 = arith.constant 0 : i32
    %c0_i32_0 = arith.constant 0 : i32
    %c0_i32_1 = arith.constant 0 : i32
    return %arg1, %c0_i32, %c0_i32_0 : i32, i32, i32
  }
  func.func @transform_10(%arg0: i32, %arg1: i32) -> (i32, i32, i32) {
    %c0_i32 = arith.constant 0 : i32
    %c0_i32_0 = arith.constant 0 : i32
    %c0_i32_1 = arith.constant 0 : i32
    return %arg1, %c0_i32, %c0_i32_0 : i32, i32, i32
  }
  func.func @transform_11(%arg0: i32, %arg1: i32) -> (i32, i32, i32) {
    %c0_i32 = arith.constant 0 : i32
    %c0_i32_0 = arith.constant 0 : i32
    %c0_i32_1 = arith.constant 0 : i32
    return %arg1, %c0_i32, %c0_i32_0 : i32, i32, i32
  }
  func.func @transform_12(%arg0: i32, %arg1: i32) -> (i32, i32, i32) {
    %c0_i32 = arith.constant 0 : i32
    %c0_i32_0 = arith.constant 0 : i32
    %c0_i32_1 = arith.constant 0 : i32
    return %arg1, %c0_i32, %c0_i32_0 : i32, i32, i32
  }
  func.func @transform_13(%arg0: i32, %arg1: i32) -> (i32, i32, i32) {
    %c0_i32 = arith.constant 0 : i32
    %c0_i32_0 = arith.constant 0 : i32
    %c0_i32_1 = arith.constant 0 : i32
    return %arg1, %c0_i32, %c0_i32_0 : i32, i32, i32
  }
  func.func @transform_14(%arg0: i32, %arg1: i32) -> (i32, i32, i32) {
    %c0_i32 = arith.constant 0 : i32
    %c0_i32_0 = arith.constant 0 : i32
    %c0_i32_1 = arith.constant 0 : i32
    return %arg1, %c0_i32, %c0_i32_0 : i32, i32, i32
  }
  func.func @transform_15(%arg0: i32, %arg1: i32) -> (i32, i32, i32) {
    %c0_i32 = arith.constant 0 : i32
    %c0_i32_0 = arith.constant 0 : i32
    %c0_i32_1 = arith.constant 0 : i32
    return %arg1, %c0_i32, %c0_i32_0 : i32, i32, i32
  }
  func.func @transform_16(%arg0: i32, %arg1: i32) -> (i32, i32, i32) {
    %c0_i32 = arith.constant 0 : i32
    %c0_i32_0 = arith.constant 0 : i32
    %c0_i32_1 = arith.constant 0 : i32
    return %arg1, %c0_i32, %c0_i32_0 : i32, i32, i32
  }
  func.func @transform_17(%arg0: i32, %arg1: i32) -> (i32, i32, i32) {
    %c0_i32 = arith.constant 0 : i32
    %c0_i32_0 = arith.constant 0 : i32
    %c0_i32_1 = arith.constant 0 : i32
    return %arg1, %c0_i32, %c0_i32_0 : i32, i32, i32
  }
  func.func @transform_18(%arg0: i32, %arg1: i32) -> (i32, i32, i32) {
    %c0_i32 = arith.constant 0 : i32
    %c0_i32_0 = arith.constant 0 : i32
    %c0_i32_1 = arith.constant 0 : i32
    return %arg1, %c0_i32, %c0_i32_0 : i32, i32, i32
  }
  func.func @transform_19(%arg0: i32, %arg1: i32) -> (i32, i32, i32) {
    %c0_i32 = arith.constant 0 : i32
    %c0_i32_0 = arith.constant 0 : i32
    %c0_i32_1 = arith.constant 0 : i32
    return %arg1, %c0_i32, %c0_i32_0 : i32, i32, i32
  }
  func.func @transform_20(%arg0: i32, %arg1: i32) -> (i32, i32, i32) {
    %c0_i32 = arith.constant 0 : i32
    %c0_i32_0 = arith.constant 0 : i32
    %c0_i32_1 = arith.constant 0 : i32
    return %arg1, %c0_i32, %c0_i32_0 : i32, i32, i32
  }
  func.func @transform_21(%arg0: i32, %arg1: i32) -> (i32, i32, i32) {
    %c0_i32 = arith.constant 0 : i32
    %c0_i32_0 = arith.constant 0 : i32
    %c0_i32_1 = arith.constant 0 : i32
    return %arg1, %c0_i32, %c0_i32_0 : i32, i32, i32
  }
  func.func @transform_22(%arg0: i32, %arg1: i32) -> (i32, i32, i32) {
    %c0_i32 = arith.constant 0 : i32
    %c0_i32_0 = arith.constant 0 : i32
    %c0_i32_1 = arith.constant 0 : i32
    return %arg1, %c0_i32, %c0_i32_0 : i32, i32, i32
  }
  func.func @transform_23(%arg0: i32, %arg1: i32) -> (i32, i32, i32) {
    %c0_i32 = arith.constant 0 : i32
    %c0_i32_0 = arith.constant 0 : i32
    %c0_i32_1 = arith.constant 0 : i32
    return %arg0, %c0_i32, %c0_i32_0 : i32, i32, i32
  }
}

</mosaic_0001>

<llo_original>
// kernel: tpu_custom_call.1
$region0: #{tpu_custom_call.1}
  #allocation0 [shape = 'u32[]', space=smem, size = 0x4, offset = 0x4, fixed_abs, tag = 'smem constant byte address 0x4 - core index']
  #allocation1 [shape = 'u32[72,128]{1,0:T(1,128)}', space=vmem, size = 0x9000, scoped, tag = 'internal scratch']
  #allocation2 [shape = 'f32[8,32]{1,0:T(8,128)}', space=vmem, size = 0x1000, scoped, tag = 'scratch operand']
  %s0 = inlined_call_operand.hbm [shape: f32[2,8,32], index: 0, kind: input, shape index: {}]
  %s1 = inlined_call_operand.hbm [shape: bf16[2,16,32], index: 1, kind: input, shape index: {}]
  %s2 = inlined_call_operand.hbm [shape: f32[2,1,16], index: 2, kind: input, shape index: {}]
  %s3 = inlined_call_operand.vmem [shape: bf16[2,32,96], index: 3, kind: input, shape index: {}]
  %s4 = inlined_call_operand.vmem [shape: f32[2,1,96], index: 4, kind: input, shape index: {}]
  %s5 = inlined_call_operand.vmem [shape: bf16[2,32,32], index: 5, kind: input, shape index: {}]
  %s6 = inlined_call_operand.vmem [shape: f32[2,1,32], index: 6, kind: input, shape index: {}]
  %s7 = inlined_call_operand.hbm [shape: f32[2,1,32], index: 7, kind: input, shape index: {}]
  %s8 = inlined_call_operand.vmem [shape: f32[2,1,32], index: 8, kind: input, shape index: {}]
  %s9 = inlined_call_operand.vmem [shape: bf16[2,32,32], index: 9, kind: input, shape index: {}]
  %s10 = inlined_call_operand.vmem [shape: f32[2,1,32], index: 10, kind: input, shape index: {}]
  %s11 = inlined_call_operand.hbm [shape: bf16[2,32,64], index: 11, kind: input, shape index: {}]
  %s12 = inlined_call_operand.vmem [shape: f32[2,1,64], index: 12, kind: input, shape index: {}]
  %s13 = inlined_call_operand.hbm [shape: bf16[2,32,32], index: 13, kind: input, shape index: {}]
  %s14 = inlined_call_operand.vmem [shape: f32[2,1,32], index: 14, kind: input, shape index: {}]
  %s15 = inlined_call_operand.hbm [shape: f32[2,1,32], index: 15, kind: input, shape index: {}]
  %s16 = inlined_call_operand.vmem [shape: f32[2,1,32], index: 16, kind: input, shape index: {}]
  %s17 = inlined_call_operand.hbm [shape: bf16[2,32,64], index: 17, kind: input, shape index: {}]
  %s18 = inlined_call_operand.vmem [shape: f32[2,1,64], index: 18, kind: input, shape index: {}]
  %s19 = inlined_call_operand.vmem [shape: bf16[2,64,32], index: 19, kind: input, shape index: {}]
  %s20 = inlined_call_operand.vmem [shape: f32[2,1,32], index: 20, kind: input, shape index: {}]
  %s21 = inlined_call_operand.hbm [shape: f32[2,1,32], index: 21, kind: input, shape index: {}]
  %s22 = inlined_call_operand.vmem [shape: f32[2,1,32], index: 22, kind: input, shape index: {}]
  %s23 = inlined_call_operand.hbm [shape: f32[2,8,32], index: 23, kind: output, shape index: {}]
  %s24 = sld [smem:[#allocation0]]
  $region169: #{tpu_custom_call.1} parent=0
    _
  %s26 = ssub.s32 1, %s24
  %s27 = scalar_select 0, %s26, %s24
  $region1: #{tpu_custom_call.1} parent=0
    #allocation3 [shape = 'u8[8192]{0}', space=vmem, size = 0x2000, scoped, tag = 'input window, operand 0']
    #allocation4 [shape = 's32[2]{0}', space=sflag, size = 0x8, scoped, tag = 'scoped memory for tpu_custom_call.1']
    #allocation5 [shape = 's32[2]{0}', space=sflag, size = 0x8, scoped, tag = 'scoped memory for tpu_custom_call.1']
    #allocation6 [shape = 'u8[8192]{0}', space=vmem, size = 0x2000, scoped, tag = 'input window, operand 1']
    #allocation7 [shape = 's32[2]{0}', space=sflag, size = 0x8, scoped, tag = 'scoped memory for tpu_custom_call.1']
    #allocation8 [shape = 'u8[1024]{0}', space=vmem, size = 0x400, scoped, tag = 'input window, operand 2']
    #allocation9 [shape = 'u8[1024]{0}', space=vmem, size = 0x400, scoped, tag = 'input window, operand 7']
    #allocation10 [shape = 's32[2]{0}', space=sflag, size = 0x8, scoped, tag = 'scoped memory for tpu_custom_call.1']
    #allocation11 [shape = 'u8[16384]{0}', space=vmem, size = 0x4000, scoped, tag = 'input window, operand 11']
    #allocation12 [shape = 'u8[16384]{0}', space=vmem, size = 0x4000, scoped, tag = 'input window, operand 13']
    #allocation13 [shape = 's32[2]{0}', space=sflag, size = 0x8, scoped, tag = 'scoped memory for tpu_custom_call.1']
    #allocation14 [shape = 'u8[1024]{0}', space=vmem, size = 0x400, scoped, tag = 'input window, operand 15']
    #allocation15 [shape = 'u8[16384]{0}', space=vmem, size = 0x4000, scoped, tag = 'input window, operand 17']
    #allocation16 [shape = 's32[2]{0}', space=sflag, size = 0x8, scoped, tag = 'scoped memory for tpu_custom_call.1']
    #allocation17 [shape = 'u8[1024]{0}', space=vmem, size = 0x400, scoped, tag = 'input window, operand 21']
    #allocation18 [shape = 'u8[8192]{0}', space=vmem, size = 0x2000, scoped, tag = 'output window, operand 0']
    %28 = vsyncpa [#allocation4], 0
    %s29 = scalar_lea.sflag [#allocation4], 1
    %30 = vsyncpa %s29, 0
    %31 = vsyncpa [#allocation7], 0
    %s32 = scalar_lea.sflag [#allocation7], 1
    %33 = vsyncpa %s32, 0
    %34 = vsyncpa [#allocation10], 0
    %s35 = scalar_lea.sflag [#allocation10], 1
    %36 = vsyncpa %s35, 0
    %37 = vsyncpa [#allocation13], 0
    %s38 = scalar_lea.sflag [#allocation13], 1
    %39 = vsyncpa %s38, 0
    %40 = vsyncpa [#allocation16], 0
    %s41 = scalar_lea.sflag [#allocation16], 1
    %42 = vsyncpa %s41, 0
    %43 = vsyncpa [#allocation5], 0
    %s44 = scalar_lea.sflag [#allocation5], 1
    %45 = vsyncpa %s44, 0
    loop: start=0, step=1, limit=6
    $region2: #{tpu_custom_call.1} parent=1 // loop_pre_header
      _
    $region3: #{tpu_custom_call.1} parent=1 // loop_header
      %s47 = sphi 0, %s51
      %p48 = scmp.ge.s32.totalorder %s47, 6
      %s54 = sphi 0, %s66
      %s55 = sphi 0, %s62
      %s56 = sphi 0, %s54
      %s57 = sphi 0, %s55
      %s58 = sphi 0, %s56
      %s59 = sphi 0, %s57
      %s69 = sphi 0, %s71
      %s72 = sphi 0, %s69
      %s73 = sphi 0, %s72
      %s89 = sphi 0, %s73
      %s95 = sphi 0, %s97
      %s98 = sphi 0, %s95
      %s99 = sphi 0, %s98
      %s115 = sphi 0, %s99
      %s121 = sphi 0, %s123
      %s124 = sphi 0, %s121
      %s125 = sphi 0, %s124
      %s141 = sphi 0, %s125
      %s147 = sphi 0, %s149
      %s150 = sphi 0, %s147
      %s151 = sphi 0, %s150
      %s167 = sphi 0, %s151
      %s173 = sphi 0, %s175
      %s176 = sphi 0, %s173
      %s177 = sphi 0, %s176
      %s193 = sphi 0, %s177
      %s199 = sphi 0, %s201
      %s202 = sphi 0, %s199
      %s203 = sphi 0, %s202
      %s219 = sphi 0, %s203
      %s225 = sphi 0, %s227
      %s228 = sphi 0, %s225
      %s229 = sphi 0, %s228
      %s245 = sphi 0, %s229
      %s251 = sphi 0, %s253
      %s254 = sphi 0, %s251
      %s255 = sphi 0, %s254
      %s271 = sphi 0, %s255
      %s277 = sphi 0, %s279
      %s280 = sphi 0, %s277
      %s281 = sphi 0, %s280
      %s297 = sphi 0, %s281
      %s303 = sphi 0, %s305
      %s306 = sphi 0, %s303
      %s307 = sphi 0, %s306
      %s323 = sphi 0, %s307
      %s329 = sphi 0, %s331
      %s332 = sphi 0, %s329
      %s333 = sphi 0, %s332
      %s349 = sphi 0, %s333
      %s355 = sphi 0, %s357
      %s358 = sphi 0, %s355
      %s359 = sphi 0, %s358
      %s375 = sphi 0, %s359
      %s381 = sphi 0, %s383
      %s384 = sphi 0, %s381
      %s385 = sphi 0, %s384
      %s401 = sphi 0, %s385
      %s407 = sphi 0, %s409
      %s410 = sphi 0, %s407
      %s411 = sphi 0, %s410
      %s427 = sphi 0, %s411
      %s433 = sphi 0, %s435
      %s436 = sphi 0, %s433
      %s437 = sphi 0, %s436
      %s453 = sphi 0, %s437
      %s459 = sphi 0, %s461
      %s462 = sphi 0, %s459
      %s463 = sphi 0, %s462
      %s479 = sphi 0, %s463
      %s485 = sphi 0, %s487
      %s488 = sphi 0, %s485
      %s489 = sphi 0, %s488
      %s505 = sphi 0, %s489
      %s511 = sphi 0, %s513
      %s514 = sphi 0, %s511
      %s515 = sphi 0, %s514
      %s531 = sphi 0, %s515
      %s537 = sphi 0, %s539
      %s540 = sphi 0, %s537
      %s541 = sphi 0, %s540
      %s557 = sphi 0, %s541
      %s563 = sphi 0, %s565
      %s566 = sphi 0, %s563
      %s567 = sphi 0, %s566
      %s583 = sphi 0, %s567
      %s589 = sphi 0, %s591
      %s592 = sphi 0, %s589
      %s593 = sphi 0, %s592
      %s609 = sphi 0, %s593
      %s615 = sphi 0, %s617
      %s618 = sphi 0, %s615
      %s619 = sphi 0, %s618
      %s635 = sphi 0, %s619
      %s641 = sphi 0, %s643
      %s644 = sphi 0, %s641
      %s645 = sphi 0, %s644
      %s661 = sphi 0, %s645
      %s667 = sphi 0, %s669
      %s670 = sphi 0, %s667
      %s671 = sphi 0, %s670
      %s687 = sphi 0, %s671
    $region4: #{tpu_custom_call.1} parent=1 // loop_header_branch
      %50 = sbr.rel (%p48) target = $region8
    $region5: #{tpu_custom_call.1} parent=1 // loop_body
      %s52 = ssub.s32 %s47, 1
      %s53 = ssub.s32 %s47, 2
      %s60 = sadd.s32 1, %s55
      %p61 = scmp.ge.s32.totalorder %s60, 2
      %s62 = scalar_select %p61, 0, %s60
      %s63 = sadd.s32 1, %s54
      %s64 = scalar_select %p61, %s63, %s54
      %p65 = scmp.ge.s32.totalorder %s64, 2
      %s66 = scalar_select %p65, 0, %s64
      %s67 = ssub.s32 %s54, %s66
      %p68 = scmp.eq.s32.totalorder %s67, 0
      %s70 = sadd.s32 %s69, 1
      %s71 = scalar_select %p68, %s69, %s70
      %p74 = pneg %p68
      %p75 = scmp.eq.s32.totalorder %s47, 3
      %p76 = por %p74, %p75
      %p77 = scmp.ne.s32.totalorder %s69, %s72
      %p78 = scmp.eq.s32.totalorder %s47, 0
      %p79 = por %p77, %p78
      %p80 = scmp.ne.s32.totalorder %s69, %s72
      %p81 = scmp.eq.s32.totalorder %s52, 3
      %p82 = por %p80, %p81
      %p83 = scmp.ne.s32.totalorder %s72, %s73
      %p84 = scmp.eq.s32.totalorder %s52, 0
      %p85 = por %p83, %p84
      %p86 = scmp.ne.s32.totalorder %s72, %s73
      %p87 = scmp.eq.s32.totalorder %s53, 3
      %p88 = por %p86, %p87
      %p90 = scmp.ne.s32.totalorder %s73, %s89
      %p91 = scmp.eq.s32.totalorder %s53, 0
      %p92 = por %p90, %p91
      %s93 = ssub.s32 %s54, %s66
      %p94 = scmp.eq.s32.totalorder %s93, 0
      %s96 = sadd.s32 %s95, 1
      %s97 = scalar_select %p94, %s95, %s96
      %p100 = pneg %p94
      %p101 = scmp.eq.s32.totalorder %s47, 3
      %p102 = por %p100, %p101
      %p103 = scmp.ne.s32.totalorder %s95, %s98
      %p104 = scmp.eq.s32.totalorder %s47, 0
      %p105 = por %p103, %p104
      %p106 = scmp.ne.s32.totalorder %s95, %s98
      %p107 = scmp.eq.s32.totalorder %s52, 3
      %p108 = por %p106, %p107
      %p109 = scmp.ne.s32.totalorder %s98, %s99
      %p110 = scmp.eq.s32.totalorder %s52, 0
      %p111 = por %p109, %p110
      %p112 = scmp.ne.s32.totalorder %s98, %s99
      %p113 = scmp.eq.s32.totalorder %s53, 3
      %p114 = por %p112, %p113
      %p116 = scmp.ne.s32.totalorder %s99, %s115
      %p117 = scmp.eq.s32.totalorder %s53, 0
      %p118 = por %p116, %p117
      %s119 = ssub.s32 %s54, %s66
      %p120 = scmp.eq.s32.totalorder %s119, 0
      %s122 = sadd.s32 %s121, 1
      %s123 = scalar_select %p120, %s121, %s122
      %p126 = pneg %p120
      %p127 = scmp.eq.s32.totalorder %s47, 3
      %p128 = por %p126, %p127
      %p129 = scmp.ne.s32.totalorder %s121, %s124
      %p130 = scmp.eq.s32.totalorder %s47, 0
      %p131 = por %p129, %p130
      %p132 = scmp.ne.s32.totalorder %s121, %s124
      %p133 = scmp.eq.s32.totalorder %s52, 3
      %p134 = por %p132, %p133
      %p135 = scmp.ne.s32.totalorder %s124, %s125
      %p136 = scmp.eq.s32.totalorder %s52, 0
      %p137 = por %p135, %p136
      %p138 = scmp.ne.s32.totalorder %s124, %s125
      %p139 = scmp.eq.s32.totalorder %s53, 3
      %p140 = por %p138, %p139
      %p142 = scmp.ne.s32.totalorder %s125, %s141
      %p143 = scmp.eq.s32.totalorder %s53, 0
      %p144 = por %p142, %p143
      %s145 = ssub.s32 %s55, %s62
      %p146 = scmp.eq.s32.totalorder %s145, 0
      %s148 = sadd.s32 %s147, 1
      %s149 = scalar_select %p146, %s147, %s148
      %p152 = pneg %p146
      %p153 = scmp.eq.s32.totalorder %s47, 3
      %p154 = por %p152, %p153
      %p155 = scmp.ne.s32.totalorder %s147, %s150
      %p156 = scmp.eq.s32.totalorder %s47, 0
      %p157 = por %p155, %p156
      %p158 = scmp.ne.s32.totalorder %s147, %s150
      %p159 = scmp.eq.s32.totalorder %s52, 3
      %p160 = por %p158, %p159
      %p161 = scmp.ne.s32.totalorder %s150, %s151
      %p162 = scmp.eq.s32.totalorder %s52, 0
      %p163 = por %p161, %p162
      %p164 = scmp.ne.s32.totalorder %s150, %s151
      %p165 = scmp.eq.s32.totalorder %s53, 3
      %p166 = por %p164, %p165
      %p168 = scmp.ne.s32.totalorder %s151, %s167
      %p169 = scmp.eq.s32.totalorder %s53, 0
      %p170 = por %p168, %p169
      %s171 = ssub.s32 %s55, %s62
      %p172 = scmp.eq.s32.totalorder %s171, 0
      %s174 = sadd.s32 %s173, 1
      %s175 = scalar_select %p172, %s173, %s174
      %p178 = pneg %p172
      %p179 = scmp.eq.s32.totalorder %s47, 3
      %p180 = por %p178, %p179
      %p181 = scmp.ne.s32.totalorder %s173, %s176
      %p182 = scmp.eq.s32.totalorder %s47, 0
      %p183 = por %p181, %p182
      %p184 = scmp.ne.s32.totalorder %s173, %s176
      %p185 = scmp.eq.s32.totalorder %s52, 3
      %p186 = por %p184, %p185
      %p187 = scmp.ne.s32.totalorder %s176, %s177
      %p188 = scmp.eq.s32.totalorder %s52, 0
      %p189 = por %p187, %p188
      %p190 = scmp.ne.s32.totalorder %s176, %s177
      %p191 = scmp.eq.s32.totalorder %s53, 3
      %p192 = por %p190, %p191
      %p194 = scmp.ne.s32.totalorder %s177, %s193
      %p195 = scmp.eq.s32.totalorder %s53, 0
      %p196 = por %p194, %p195
      %s197 = ssub.s32 %s55, %s62
      %p198 = scmp.eq.s32.totalorder %s197, 0
      %s200 = sadd.s32 %s199, 1
      %s201 = scalar_select %p198, %s199, %s200
      %p204 = pneg %p198
      %p205 = scmp.eq.s32.totalorder %s47, 3
      %p206 = por %p204, %p205
      %p207 = scmp.ne.s32.totalorder %s199, %s202
      %p208 = scmp.eq.s32.totalorder %s47, 0
      %p209 = por %p207, %p208
      %p210 = scmp.ne.s32.totalorder %s199, %s202
      %p211 = scmp.eq.s32.totalorder %s52, 3
      %p212 = por %p210, %p211
      %p213 = scmp.ne.s32.totalorder %s202, %s203
      %p214 = scmp.eq.s32.totalorder %s52, 0
      %p215 = por %p213, %p214
      %p216 = scmp.ne.s32.totalorder %s202, %s203
      %p217 = scmp.eq.s32.totalorder %s53, 3
      %p218 = por %p216, %p217
      %p220 = scmp.ne.s32.totalorder %s203, %s219
      %p221 = scmp.eq.s32.totalorder %s53, 0
      %p222 = por %p220, %p221
      %s223 = ssub.s32 %s55, %s62
      %p224 = scmp.eq.s32.totalorder %s223, 0
      %s226 = sadd.s32 %s225, 1
      %s227 = scalar_select %p224, %s225, %s226
      %p230 = pneg %p224
      %p231 = scmp.eq.s32.totalorder %s47, 3
      %p232 = por %p230, %p231
      %p233 = scmp.ne.s32.totalorder %s225, %s228
      %p234 = scmp.eq.s32.totalorder %s47, 0
      %p235 = por %p233, %p234
      %p236 = scmp.ne.s32.totalorder %s225, %s228
      %p237 = scmp.eq.s32.totalorder %s52, 3
      %p238 = por %p236, %p237
      %p239 = scmp.ne.s32.totalorder %s228, %s229
      %p240 = scmp.eq.s32.totalorder %s52, 0
      %p241 = por %p239, %p240
      %p242 = scmp.ne.s32.totalorder %s228, %s229
      %p243 = scmp.eq.s32.totalorder %s53, 3
      %p244 = por %p242, %p243
      %p246 = scmp.ne.s32.totalorder %s229, %s245
      %p247 = scmp.eq.s32.totalorder %s53, 0
      %p248 = por %p246, %p247
      %s249 = ssub.s32 %s55, %s62
      %p250 = scmp.eq.s32.totalorder %s249, 0
      %s252 = sadd.s32 %s251, 1
      %s253 = scalar_select %p250, %s251, %s252
      %p256 = pneg %p250
      %p257 = scmp.eq.s32.totalorder %s47, 3
      %p258 = por %p256, %p257
      %p259 = scmp.ne.s32.totalorder %s251, %s254
      %p260 = scmp.eq.s32.totalorder %s47, 0
      %p261 = por %p259, %p260
      %p262 = scmp.ne.s32.totalorder %s251, %s254
      %p263 = scmp.eq.s32.totalorder %s52, 3
      %p264 = por %p262, %p263
      %p265 = scmp.ne.s32.totalorder %s254, %s255
      %p266 = scmp.eq.s32.totalorder %s52, 0
      %p267 = por %p265, %p266
      %p268 = scmp.ne.s32.totalorder %s254, %s255
      %p269 = scmp.eq.s32.totalorder %s53, 3
      %p270 = por %p268, %p269
      %p272 = scmp.ne.s32.totalorder %s255, %s271
      %p273 = scmp.eq.s32.totalorder %s53, 0
      %p274 = por %p272, %p273
      %s275 = ssub.s32 %s55, %s62
      %p276 = scmp.eq.s32.totalorder %s275, 0
      %s278 = sadd.s32 %s277, 1
      %s279 = scalar_select %p276, %s277, %s278
      %p282 = pneg %p276
      %p283 = scmp.eq.s32.totalorder %s47, 3
      %p284 = por %p282, %p283
      %p285 = scmp.ne.s32.totalorder %s277, %s280
      %p286 = scmp.eq.s32.totalorder %s47, 0
      %p287 = por %p285, %p286
      %p288 = scmp.ne.s32.totalorder %s277, %s280
      %p289 = scmp.eq.s32.totalorder %s52, 3
      %p290 = por %p288, %p289
      %p291 = scmp.ne.s32.totalorder %s280, %s281
      %p292 = scmp.eq.s32.totalorder %s52, 0
      %p293 = por %p291, %p292
      %p294 = scmp.ne.s32.totalorder %s280, %s281
      %p295 = scmp.eq.s32.totalorder %s53, 3
      %p296 = por %p294, %p295
      %p298 = scmp.ne.s32.totalorder %s281, %s297
      %p299 = scmp.eq.s32.totalorder %s53, 0
      %p300 = por %p298, %p299
      %s301 = ssub.s32 %s55, %s62
      %p302 = scmp.eq.s32.totalorder %s301, 0
      %s304 = sadd.s32 %s303, 1
      %s305 = scalar_select %p302, %s303, %s304
      %p308 = pneg %p302
      %p309 = scmp.eq.s32.totalorder %s47, 3
      %p310 = por %p308, %p309
      %p311 = scmp.ne.s32.totalorder %s303, %s306
      %p312 = scmp.eq.s32.totalorder %s47, 0
      %p313 = por %p311, %p312
      %p314 = scmp.ne.s32.totalorder %s303, %s306
      %p315 = scmp.eq.s32.totalorder %s52, 3
      %p316 = por %p314, %p315
      %p317 = scmp.ne.s32.totalorder %s306, %s307
      %p318 = scmp.eq.s32.totalorder %s52, 0
      %p319 = por %p317, %p318
      %p320 = scmp.ne.s32.totalorder %s306, %s307
      %p321 = scmp.eq.s32.totalorder %s53, 3
      %p322 = por %p320, %p321
      %p324 = scmp.ne.s32.totalorder %s307, %s323
      %p325 = scmp.eq.s32.totalorder %s53, 0
      %p326 = por %p324, %p325
      %s327 = ssub.s32 %s55, %s62
      %p328 = scmp.eq.s32.totalorder %s327, 0
      %s330 = sadd.s32 %s329, 1
      %s331 = scalar_select %p328, %s329, %s330
      %p334 = pneg %p328
      %p335 = scmp.eq.s32.totalorder %s47, 3
      %p336 = por %p334, %p335
      %p337 = scmp.ne.s32.totalorder %s329, %s332
      %p338 = scmp.eq.s32.totalorder %s47, 0
      %p339 = por %p337, %p338
      %p340 = scmp.ne.s32.totalorder %s329, %s332
      %p341 = scmp.eq.s32.totalorder %s52, 3
      %p342 = por %p340, %p341
      %p343 = scmp.ne.s32.totalorder %s332, %s333
      %p344 = scmp.eq.s32.totalorder %s52, 0
      %p345 = por %p343, %p344
      %p346 = scmp.ne.s32.totalorder %s332, %s333
      %p347 = scmp.eq.s32.totalorder %s53, 3
      %p348 = por %p346, %p347
      %p350 = scmp.ne.s32.totalorder %s333, %s349
      %p351 = scmp.eq.s32.totalorder %s53, 0
      %p352 = por %p350, %p351
      %s353 = ssub.s32 %s55, %s62
      %p354 = scmp.eq.s32.totalorder %s353, 0
      %s356 = sadd.s32 %s355, 1
      %s357 = scalar_select %p354, %s355, %s356
      %p360 = pneg %p354
      %p361 = scmp.eq.s32.totalorder %s47, 3
      %p362 = por %p360, %p361
      %p363 = scmp.ne.s32.totalorder %s355, %s358
      %p364 = scmp.eq.s32.totalorder %s47, 0
      %p365 = por %p363, %p364
      %p366 = scmp.ne.s32.totalorder %s355, %s358
      %p367 = scmp.eq.s32.totalorder %s52, 3
      %p368 = por %p366, %p367
      %p369 = scmp.ne.s32.totalorder %s358, %s359
      %p370 = scmp.eq.s32.totalorder %s52, 0
      %p371 = por %p369, %p370
      %p372 = scmp.ne.s32.totalorder %s358, %s359
      %p373 = scmp.eq.s32.totalorder %s53, 3
      %p374 = por %p372, %p373
      %p376 = scmp.ne.s32.totalorder %s359, %s375
      %p377 = scmp.eq.s32.totalorder %s53, 0
      %p378 = por %p376, %p377
      %s379 = ssub.s32 %s55, %s62
      %p380 = scmp.eq.s32.totalorder %s379, 0
      %s382 = sadd.s32 %s381, 1
      %s383 = scalar_select %p380, %s381, %s382
      %p386 = pneg %p380
      %p387 = scmp.eq.s32.totalorder %s47, 3
      %p388 = por %p386, %p387
      %p389 = scmp.ne.s32.totalorder %s381, %s384
      %p390 = scmp.eq.s32.totalorder %s47, 0
      %p391 = por %p389, %p390
      %p392 = scmp.ne.s32.totalorder %s381, %s384
      %p393 = scmp.eq.s32.totalorder %s52, 3
      %p394 = por %p392, %p393
      %p395 = scmp.ne.s32.totalorder %s384, %s385
      %p396 = scmp.eq.s32.totalorder %s52, 0
      %p397 = por %p395, %p396
      %p398 = scmp.ne.s32.totalorder %s384, %s385
      %p399 = scmp.eq.s32.totalorder %s53, 3
      %p400 = por %p398, %p399
      %p402 = scmp.ne.s32.totalorder %s385, %s401
      %p403 = scmp.eq.s32.totalorder %s53, 0
      %p404 = por %p402, %p403
      %s405 = ssub.s32 %s55, %s62
      %p406 = scmp.eq.s32.totalorder %s405, 0
      %s408 = sadd.s32 %s407, 1
      %s409 = scalar_select %p406, %s407, %s408
      %p412 = pneg %p406
      %p413 = scmp.eq.s32.totalorder %s47, 3
      %p414 = por %p412, %p413
      %p415 = scmp.ne.s32.totalorder %s407, %s410
      %p416 = scmp.eq.s32.totalorder %s47, 0
      %p417 = por %p415, %p416
      %p418 = scmp.ne.s32.totalorder %s407, %s410
      %p419 = scmp.eq.s32.totalorder %s52, 3
      %p420 = por %p418, %p419
      %p421 = scmp.ne.s32.totalorder %s410, %s411
      %p422 = scmp.eq.s32.totalorder %s52, 0
      %p423 = por %p421, %p422
      %p424 = scmp.ne.s32.totalorder %s410, %s411
      %p425 = scmp.eq.s32.totalorder %s53, 3
      %p426 = por %p424, %p425
      %p428 = scmp.ne.s32.totalorder %s411, %s427
      %p429 = scmp.eq.s32.totalorder %s53, 0
      %p430 = por %p428, %p429
      %s431 = ssub.s32 %s55, %s62
      %p432 = scmp.eq.s32.totalorder %s431, 0
      %s434 = sadd.s32 %s433, 1
      %s435 = scalar_select %p432, %s433, %s434
      %p438 = pneg %p432
      %p439 = scmp.eq.s32.totalorder %s47, 3
      %p440 = por %p438, %p439
      %p441 = scmp.ne.s32.totalorder %s433, %s436
      %p442 = scmp.eq.s32.totalorder %s47, 0
      %p443 = por %p441, %p442
      %p444 = scmp.ne.s32.totalorder %s433, %s436
      %p445 = scmp.eq.s32.totalorder %s52, 3
      %p446 = por %p444, %p445
      %p447 = scmp.ne.s32.totalorder %s436, %s437
      %p448 = scmp.eq.s32.totalorder %s52, 0
      %p449 = por %p447, %p448
      %p450 = scmp.ne.s32.totalorder %s436, %s437
      %p451 = scmp.eq.s32.totalorder %s53, 3
      %p452 = por %p450, %p451
      %p454 = scmp.ne.s32.totalorder %s437, %s453
      %p455 = scmp.eq.s32.totalorder %s53, 0
      %p456 = por %p454, %p455
      %s457 = ssub.s32 %s55, %s62
      %p458 = scmp.eq.s32.totalorder %s457, 0
      %s460 = sadd.s32 %s459, 1
      %s461 = scalar_select %p458, %s459, %s460
      %p464 = pneg %p458
      %p465 = scmp.eq.s32.totalorder %s47, 3
      %p466 = por %p464, %p465
      %p467 = scmp.ne.s32.totalorder %s459, %s462
      %p468 = scmp.eq.s32.totalorder %s47, 0
      %p469 = por %p467, %p468
      %p470 = scmp.ne.s32.totalorder %s459, %s462
      %p471 = scmp.eq.s32.totalorder %s52, 3
      %p472 = por %p470, %p471
      %p473 = scmp.ne.s32.totalorder %s462, %s463
      %p474 = scmp.eq.s32.totalorder %s52, 0
      %p475 = por %p473, %p474
      %p476 = scmp.ne.s32.totalorder %s462, %s463
      %p477 = scmp.eq.s32.totalorder %s53, 3
      %p478 = por %p476, %p477
      %p480 = scmp.ne.s32.totalorder %s463, %s479
      %p481 = scmp.eq.s32.totalorder %s53, 0
      %p482 = por %p480, %p481
      %s483 = ssub.s32 %s55, %s62
      %p484 = scmp.eq.s32.totalorder %s483, 0
      %s486 = sadd.s32 %s485, 1
      %s487 = scalar_select %p484, %s485, %s486
      %p490 = pneg %p484
      %p491 = scmp.eq.s32.totalorder %s47, 3
      %p492 = por %p490, %p491
      %p493 = scmp.ne.s32.totalorder %s485, %s488
      %p494 = scmp.eq.s32.totalorder %s47, 0
      %p495 = por %p493, %p494
      %p496 = scmp.ne.s32.totalorder %s485, %s488
      %p497 = scmp.eq.s32.totalorder %s52, 3
      %p498 = por %p496, %p497
      %p499 = scmp.ne.s32.totalorder %s488, %s489
      %p500 = scmp.eq.s32.totalorder %s52, 0
      %p501 = por %p499, %p500
      %p502 = scmp.ne.s32.totalorder %s488, %s489
      %p503 = scmp.eq.s32.totalorder %s53, 3
      %p504 = por %p502, %p503
      %p506 = scmp.ne.s32.totalorder %s489, %s505
      %p507 = scmp.eq.s32.totalorder %s53, 0
      %p508 = por %p506, %p507
      %s509 = ssub.s32 %s55, %s62
      %p510 = scmp.eq.s32.totalorder %s509, 0
      %s512 = sadd.s32 %s511, 1
      %s513 = scalar_select %p510, %s511, %s512
      %p516 = pneg %p510
      %p517 = scmp.eq.s32.totalorder %s47, 3
      %p518 = por %p516, %p517
      %p519 = scmp.ne.s32.totalorder %s511, %s514
      %p520 = scmp.eq.s32.totalorder %s47, 0
      %p521 = por %p519, %p520
      %p522 = scmp.ne.s32.totalorder %s511, %s514
      %p523 = scmp.eq.s32.totalorder %s52, 3
      %p524 = por %p522, %p523
      %p525 = scmp.ne.s32.totalorder %s514, %s515
      %p526 = scmp.eq.s32.totalorder %s52, 0
      %p527 = por %p525, %p526
      %p528 = scmp.ne.s32.totalorder %s514, %s515
      %p529 = scmp.eq.s32.totalorder %s53, 3
      %p530 = por %p528, %p529
      %p532 = scmp.ne.s32.totalorder %s515, %s531
      %p533 = scmp.eq.s32.totalorder %s53, 0
      %p534 = por %p532, %p533
      %s535 = ssub.s32 %s55, %s62
      %p536 = scmp.eq.s32.totalorder %s535, 0
      %s538 = sadd.s32 %s537, 1
      %s539 = scalar_select %p536, %s537, %s538
      %p542 = pneg %p536
      %p543 = scmp.eq.s32.totalorder %s47, 3
      %p544 = por %p542, %p543
      %p545 = scmp.ne.s32.totalorder %s537, %s540
      %p546 = scmp.eq.s32.totalorder %s47, 0
      %p547 = por %p545, %p546
      %p548 = scmp.ne.s32.totalorder %s537, %s540
      %p549 = scmp.eq.s32.totalorder %s52, 3
      %p550 = por %p548, %p549
      %p551 = scmp.ne.s32.totalorder %s540, %s541
      %p552 = scmp.eq.s32.totalorder %s52, 0
      %p553 = por %p551, %p552
      %p554 = scmp.ne.s32.totalorder %s540, %s541
      %p555 = scmp.eq.s32.totalorder %s53, 3
      %p556 = por %p554, %p555
      %p558 = scmp.ne.s32.totalorder %s541, %s557
      %p559 = scmp.eq.s32.totalorder %s53, 0
      %p560 = por %p558, %p559
      %s561 = ssub.s32 %s55, %s62
      %p562 = scmp.eq.s32.totalorder %s561, 0
      %s564 = sadd.s32 %s563, 1
      %s565 = scalar_select %p562, %s563, %s564
      %p568 = pneg %p562
      %p569 = scmp.eq.s32.totalorder %s47, 3
      %p570 = por %p568, %p569
      %p571 = scmp.ne.s32.totalorder %s563, %s566
      %p572 = scmp.eq.s32.totalorder %s47, 0
      %p573 = por %p571, %p572
      %p574 = scmp.ne.s32.totalorder %s563, %s566
      %p575 = scmp.eq.s32.totalorder %s52, 3
      %p576 = por %p574, %p575
      %p577 = scmp.ne.s32.totalorder %s566, %s567
      %p578 = scmp.eq.s32.totalorder %s52, 0
      %p579 = por %p577, %p578
      %p580 = scmp.ne.s32.totalorder %s566, %s567
      %p581 = scmp.eq.s32.totalorder %s53, 3
      %p582 = por %p580, %p581
      %p584 = scmp.ne.s32.totalorder %s567, %s583
      %p585 = scmp.eq.s32.totalorder %s53, 0
      %p586 = por %p584, %p585
      %s587 = ssub.s32 %s55, %s62
      %p588 = scmp.eq.s32.totalorder %s587, 0
      %s590 = sadd.s32 %s589, 1
      %s591 = scalar_select %p588, %s589, %s590
      %p594 = pneg %p588
      %p595 = scmp.eq.s32.totalorder %s47, 3
      %p596 = por %p594, %p595
      %p597 = scmp.ne.s32.totalorder %s589, %s592
      %p598 = scmp.eq.s32.totalorder %s47, 0
      %p599 = por %p597, %p598
      %p600 = scmp.ne.s32.totalorder %s589, %s592
      %p601 = scmp.eq.s32.totalorder %s52, 3
      %p602 = por %p600, %p601
      %p603 = scmp.ne.s32.totalorder %s592, %s593
      %p604 = scmp.eq.s32.totalorder %s52, 0
      %p605 = por %p603, %p604
      %p606 = scmp.ne.s32.totalorder %s592, %s593
      %p607 = scmp.eq.s32.totalorder %s53, 3
      %p608 = por %p606, %p607
      %p610 = scmp.ne.s32.totalorder %s593, %s609
      %p611 = scmp.eq.s32.totalorder %s53, 0
      %p612 = por %p610, %p611
      %s613 = ssub.s32 %s55, %s62
      %p614 = scmp.eq.s32.totalorder %s613, 0
      %s616 = sadd.s32 %s615, 1
      %s617 = scalar_select %p614, %s615, %s616
      %p620 = pneg %p614
      %p621 = scmp.eq.s32.totalorder %s47, 3
      %p622 = por %p620, %p621
      %p623 = scmp.ne.s32.totalorder %s615, %s618
      %p624 = scmp.eq.s32.totalorder %s47, 0
      %p625 = por %p623, %p624
      %p626 = scmp.ne.s32.totalorder %s615, %s618
      %p627 = scmp.eq.s32.totalorder %s52, 3
      %p628 = por %p626, %p627
      %p629 = scmp.ne.s32.totalorder %s618, %s619
      %p630 = scmp.eq.s32.totalorder %s52, 0
      %p631 = por %p629, %p630
      %p632 = scmp.ne.s32.totalorder %s618, %s619
      %p633 = scmp.eq.s32.totalorder %s53, 3
      %p634 = por %p632, %p633
      %p636 = scmp.ne.s32.totalorder %s619, %s635
      %p637 = scmp.eq.s32.totalorder %s53, 0
      %p638 = por %p636, %p637
      %s639 = ssub.s32 %s55, %s62
      %p640 = scmp.eq.s32.totalorder %s639, 0
      %s642 = sadd.s32 %s641, 1
      %s643 = scalar_select %p640, %s641, %s642
      %p646 = pneg %p640
      %p647 = scmp.eq.s32.totalorder %s47, 3
      %p648 = por %p646, %p647
      %p649 = scmp.ne.s32.totalorder %s641, %s644
      %p650 = scmp.eq.s32.totalorder %s47, 0
      %p651 = por %p649, %p650
      %p652 = scmp.ne.s32.totalorder %s641, %s644
      %p653 = scmp.eq.s32.totalorder %s52, 3
      %p654 = por %p652, %p653
      %p655 = scmp.ne.s32.totalorder %s644, %s645
      %p656 = scmp.eq.s32.totalorder %s52, 0
      %p657 = por %p655, %p656
      %p658 = scmp.ne.s32.totalorder %s644, %s645
      %p659 = scmp.eq.s32.totalorder %s53, 3
      %p660 = por %p658, %p659
      %p662 = scmp.ne.s32.totalorder %s645, %s661
      %p663 = scmp.eq.s32.totalorder %s53, 0
      %p664 = por %p662, %p663
      %s665 = ssub.s32 %s54, %s66
      %p666 = scmp.eq.s32.totalorder %s665, 0
      %s668 = sadd.s32 %s667, 1
      %s669 = scalar_select %p666, %s667, %s668
      %p672 = pneg %p666
      %p673 = scmp.eq.s32.totalorder %s47, 3
      %p674 = por %p672, %p673
      %p675 = scmp.ne.s32.totalorder %s667, %s670
      %p676 = scmp.eq.s32.totalorder %s47, 0
      %p677 = por %p675, %p676
      %p678 = scmp.ne.s32.totalorder %s667, %s670
      %p679 = scmp.eq.s32.totalorder %s52, 3
      %p680 = por %p678, %p679
      %p681 = scmp.ne.s32.totalorder %s670, %s671
      %p682 = scmp.eq.s32.totalorder %s52, 0
      %p683 = por %p681, %p682
      %p684 = scmp.ne.s32.totalorder %s670, %s671
      %p685 = scmp.eq.s32.totalorder %s53, 3
      %p686 = por %p684, %p685
      %p688 = scmp.ne.s32.totalorder %s671, %s687
      %p689 = scmp.eq.s32.totalorder %s53, 0
      %p690 = por %p688, %p689
      %p691 = scmp.le.s32.totalorder 1, %s47
      %p692 = scmp.lt.s32.totalorder %s47, 5
      %p693 = pnand %p691, %p692
      %p694 = pneg %p693
      // Predicated region
      $region9: #{tpu_custom_call.1} parent=5 // pred_check
        _
      $region10: #{tpu_custom_call.1} parent=5 // pred_check_branch
        %696 = sbr.rel (%p693) target = $region12
      $region11: #{tpu_custom_call.1} parent=5 // pred_region
        %s697 = ssub.s32 %s47, 1
      $region12: #{tpu_custom_call.1} parent=5 // pred_fallthru
        _
      %p698 = scmp.lt.s32.totalorder %s47, 4
      // Predicated region
      $region13: #{tpu_custom_call.1} parent=5 // pred_check
        %p699 = pneg %p698
      $region14: #{tpu_custom_call.1} parent=5 // pred_check_branch
        %701 = sbr.rel (%p699) target = $region16
      $region15: #{tpu_custom_call.1} parent=5 // pred_region
        // Predicated region
        $region17: #{tpu_custom_call.1} parent=15 // pred_check
          %p702 = pneg %p79
        $region18: #{tpu_custom_call.1} parent=15 // pred_check_branch
          %704 = sbr.rel (%p702) target = $region20
        $region19: #{tpu_custom_call.1} parent=15 // pred_region
          %s705 = sand.u32 %s69, 1
          %s706 = scalar_lea.sflag [#allocation4], %s705
          %s707 = sand.u32 %s69, 1
          %s708 = smul.addr %s707, 8
          %s709 = scalar_lea.vmem [#allocation3], %s708
          %711 = vsyncadd %s706, 0
          %s712 = smul.addr %s54, 8
          %s713 = scalar_lea.hbm %s0, %s712
          %s715 = sshll.u32 %s713, 4
          %s716 = int_to_ptr.hbm [resolvable:$true] %s715
          %s717 = sshll.u32 %s709, 4
          %s718 = int_to_ptr.vmem [resolvable:$true] %s717
          %720 = dma.hbm_to_vmem [thread:$0]  %s716, 128, %s718, %s706
        $region20: #{tpu_custom_call.1} parent=15 // pred_fallthru
          _
        // Predicated region
        $region21: #{tpu_custom_call.1} parent=15 // pred_check
          %p721 = pneg %p105
        $region22: #{tpu_custom_call.1} parent=15 // pred_check_branch
          %723 = sbr.rel (%p721) target = $region24
        $region23: #{tpu_custom_call.1} parent=15 // pred_region
          %s724 = sand.u32 %s47, 1
          %s725 = scalar_lea.sflag [#allocation7], %s724
          %s726 = sand.u32 %s95, 1
          %s727 = smul.addr %s726, 8
          %s728 = scalar_lea.vmem [#allocation6], %s727
          %730 = vsyncadd %s725, 0
          %s731 = smul.addr %s54, 2
          %s732 = smul.addr %s731, 4
          %s733 = scalar_lea.hbm %s1, %s732
          %s734 = sshll.u32 %s733, 4
          %s735 = int_to_ptr.hbm [resolvable:$true] %s734
          %s736 = sshll.u32 %s728, 4
          %s737 = int_to_ptr.vmem [resolvable:$true] %s736
          %742 = dma.hbm_to_vmem [thread:$0]  %s735, 128, %s737, %s725, 64, 64, 4
        $region24: #{tpu_custom_call.1} parent=15 // pred_fallthru
          _
        // Predicated region
        $region25: #{tpu_custom_call.1} parent=15 // pred_check
          %p743 = pneg %p131
        $region26: #{tpu_custom_call.1} parent=15 // pred_check_branch
          %745 = sbr.rel (%p743) target = $region28
        $region27: #{tpu_custom_call.1} parent=15 // pred_region
          %s746 = sand.u32 %s47, 1
          %s747 = scalar_lea.sflag [#allocation7], %s746
          %s748 = sand.u32 %s121, 1
          %s749 = scalar_lea.vmem [#allocation8], %s748
          %751 = vsyncadd %s747, 0
          %s752 = scalar_lea.hbm %s2, %s54
          %s754 = sshll.u32 %s752, 4
          %s755 = int_to_ptr.hbm [resolvable:$true] %s754
          %s756 = sshll.u32 %s749, 4
          %s757 = int_to_ptr.vmem [resolvable:$true] %s756
          %759 = dma.hbm_to_vmem [thread:$0]  %s755, 16, %s757, %s747
        $region28: #{tpu_custom_call.1} parent=15 // pred_fallthru
          _
        // Predicated region
        $region29: #{tpu_custom_call.1} parent=15 // pred_check
          %p760 = pneg %p157
        $region30: #{tpu_custom_call.1} parent=15 // pred_check_branch
          %762 = sbr.rel (%p760) target = $region32
        $region31: #{tpu_custom_call.1} parent=15 // pred_region
          %p763 = scmp.lt.s32.totalorder %s55, 1
          %s764 = scalar_select %p763, %s55, 1
          %s765 = smul.addr %s764, 4
          %s766 = smul.addr %s765, 4
          %s767 = scalar_lea.vmem %s3, %s766
        $region32: #{tpu_custom_call.1} parent=15 // pred_fallthru
          _
        // Predicated region
        $region33: #{tpu_custom_call.1} parent=15 // pred_check
          %p768 = pneg %p183
        $region34: #{tpu_custom_call.1} parent=15 // pred_check_branch
          %770 = sbr.rel (%p768) target = $region36
        $region35: #{tpu_custom_call.1} parent=15 // pred_region
          %p771 = scmp.lt.s32.totalorder %s55, 1
          %s772 = scalar_select %p771, %s55, 1
          %s773 = scalar_lea.vmem %s4, %s772
        $region36: #{tpu_custom_call.1} parent=15 // pred_fallthru
          _
        // Predicated region
        $region37: #{tpu_custom_call.1} parent=15 // pred_check
          %p774 = pneg %p209
        $region38: #{tpu_custom_call.1} parent=15 // pred_check_branch
          %776 = sbr.rel (%p774) target = $region40
        $region39: #{tpu_custom_call.1} parent=15 // pred_region
          %p777 = scmp.lt.s32.totalorder %s55, 1
          %s778 = scalar_select %p777, %s55, 1
          %s779 = smul.addr %s778, 4
          %s780 = smul.addr %s779, 4
          %s781 = scalar_lea.vmem %s5, %s780
        $region40: #{tpu_custom_call.1} parent=15 // pred_fallthru
          _
        // Predicated region
        $region41: #{tpu_custom_call.1} parent=15 // pred_check
          %p782 = pneg %p235
        $region42: #{tpu_custom_call.1} parent=15 // pred_check_branch
          %784 = sbr.rel (%p782) target = $region44
        $region43: #{tpu_custom_call.1} parent=15 // pred_region
          %p785 = scmp.lt.s32.totalorder %s55, 1
          %s786 = scalar_select %p785, %s55, 1
          %s787 = scalar_lea.vmem %s6, %s786
        $region44: #{tpu_custom_call.1} parent=15 // pred_fallthru
          _
        // Predicated region
        $region45: #{tpu_custom_call.1} parent=15 // pred_check
          %p788 = pneg %p261
        $region46: #{tpu_custom_call.1} parent=15 // pred_check_branch
          %790 = sbr.rel (%p788) target = $region48
        $region47: #{tpu_custom_call.1} parent=15 // pred_region
          %s791 = sand.u32 %s47, 1
          %s792 = scalar_lea.sflag [#allocation10], %s791
          %s793 = sand.u32 %s251, 1
          %s794 = scalar_lea.vmem [#allocation9], %s793
          %796 = vsyncadd %s792, 0
          %s797 = scalar_lea.hbm %s7, %s55
          %s799 = sshll.u32 %s797, 4
          %s800 = int_to_ptr.hbm [resolvable:$true] %s799
          %s801 = sshll.u32 %s794, 4
          %s802 = int_to_ptr.vmem [resolvable:$true] %s801
          %804 = dma.hbm_to_vmem [thread:$0]  %s800, 16, %s802, %s792
        $region48: #{tpu_custom_call.1} parent=15 // pred_fallthru
          _
        // Predicated region
        $region49: #{tpu_custom_call.1} parent=15 // pred_check
          %p805 = pneg %p287
        $region50: #{tpu_custom_call.1} parent=15 // pred_check_branch
          %807 = sbr.rel (%p805) target = $region52
        $region51: #{tpu_custom_call.1} parent=15 // pred_region
          %p808 = scmp.lt.s32.totalorder %s55, 1
          %s809 = scalar_select %p808, %s55, 1
          %s810 = scalar_lea.vmem %s8, %s809
        $region52: #{tpu_custom_call.1} parent=15 // pred_fallthru
          _
        // Predicated region
        $region53: #{tpu_custom_call.1} parent=15 // pred_check
          %p811 = pneg %p313
        $region54: #{tpu_custom_call.1} parent=15 // pred_check_branch
          %813 = sbr.rel (%p811) target = $region56
        $region55: #{tpu_custom_call.1} parent=15 // pred_region
          %p814 = scmp.lt.s32.totalorder %s55, 1
          %s815 = scalar_select %p814, %s55, 1
          %s816 = smul.addr %s815, 4
          %s817 = smul.addr %s816, 4
          %s818 = scalar_lea.vmem %s9, %s817
        $region56: #{tpu_custom_call.1} parent=15 // pred_fallthru
          _
        // Predicated region
        $region57: #{tpu_custom_call.1} parent=15 // pred_check
          %p819 = pneg %p339
        $region58: #{tpu_custom_call.1} parent=15 // pred_check_branch
          %821 = sbr.rel (%p819) target = $region60
        $region59: #{tpu_custom_call.1} parent=15 // pred_region
          %p822 = scmp.lt.s32.totalorder %s55, 1
          %s823 = scalar_select %p822, %s55, 1
          %s824 = scalar_lea.vmem %s10, %s823
        $region60: #{tpu_custom_call.1} parent=15 // pred_fallthru
          _
        // Predicated region
        $region61: #{tpu_custom_call.1} parent=15 // pred_check
          %p825 = pneg %p365
        $region62: #{tpu_custom_call.1} parent=15 // pred_check_branch
          %827 = sbr.rel (%p825) target = $region64
        $region63: #{tpu_custom_call.1} parent=15 // pred_region
          %s828 = sand.u32 %s47, 1
          %s829 = scalar_lea.sflag [#allocation10], %s828
          %s830 = sand.u32 %s355, 1
          %s831 = smul.addr %s830, 16
          %s832 = scalar_lea.vmem [#allocation11], %s831
          %834 = vsyncadd %s829, 0
          %s835 = smul.addr %s55, 4
          %s836 = smul.addr %s835, 4
          %s837 = scalar_lea.hbm %s11, %s836
          %s838 = sshll.u32 %s837, 4
          %s839 = int_to_ptr.hbm [resolvable:$true] %s838
          %s840 = sshll.u32 %s832, 4
          %s841 = int_to_ptr.vmem [resolvable:$true] %s840
          %846 = dma.hbm_to_vmem [thread:$0]  %s839, 256, %s841, %s829, 64, 64, 4
        $region64: #{tpu_custom_call.1} parent=15 // pred_fallthru
          _
        // Predicated region
        $region65: #{tpu_custom_call.1} parent=15 // pred_check
          %p847 = pneg %p391
        $region66: #{tpu_custom_call.1} parent=15 // pred_check_branch
          %849 = sbr.rel (%p847) target = $region68
        $region67: #{tpu_custom_call.1} parent=15 // pred_region
          %p850 = scmp.lt.s32.totalorder %s55, 1
          %s851 = scalar_select %p850, %s55, 1
          %s852 = scalar_lea.vmem %s12, %s851
        $region68: #{tpu_custom_call.1} parent=15 // pred_fallthru
          _
        // Predicated region
        $region69: #{tpu_custom_call.1} parent=15 // pred_check
          %p853 = pneg %p417
        $region70: #{tpu_custom_call.1} parent=15 // pred_check_branch
          %855 = sbr.rel (%p853) target = $region72
        $region71: #{tpu_custom_call.1} parent=15 // pred_region
          %s856 = sand.u32 %s47, 1
          %s857 = scalar_lea.sflag [#allocation13], %s856
          %s858 = sand.u32 %s407, 1
          %s859 = smul.addr %s858, 16
          %s860 = scalar_lea.vmem [#allocation12], %s859
          %862 = vsyncadd %s857, 0
          %s863 = smul.addr %s55, 4
          %s864 = smul.addr %s863, 4
          %s865 = scalar_lea.hbm %s13, %s864
          %s866 = sshll.u32 %s865, 4
          %s867 = int_to_ptr.hbm [resolvable:$true] %s866
          %s868 = sshll.u32 %s860, 4
          %s869 = int_to_ptr.vmem [resolvable:$true] %s868
          %874 = dma.hbm_to_vmem [thread:$0]  %s867, 256, %s869, %s857, 64, 64, 4
        $region72: #{tpu_custom_call.1} parent=15 // pred_fallthru
          _
        // Predicated region
        $region73: #{tpu_custom_call.1} parent=15 // pred_check
          %p875 = pneg %p443
        $region74: #{tpu_custom_call.1} parent=15 // pred_check_branch
          %877 = sbr.rel (%p875) target = $region76
        $region75: #{tpu_custom_call.1} parent=15 // pred_region
          %p878 = scmp.lt.s32.totalorder %s55, 1
          %s879 = scalar_select %p878, %s55, 1
          %s880 = scalar_lea.vmem %s14, %s879
        $region76: #{tpu_custom_call.1} parent=15 // pred_fallthru
          _
        // Predicated region
        $region77: #{tpu_custom_call.1} parent=15 // pred_check
          %p881 = pneg %p469
        $region78: #{tpu_custom_call.1} parent=15 // pred_check_branch
          %883 = sbr.rel (%p881) target = $region80
        $region79: #{tpu_custom_call.1} parent=15 // pred_region
          %s884 = sand.u32 %s47, 1
          %s885 = scalar_lea.sflag [#allocation13], %s884
          %s886 = sand.u32 %s459, 1
          %s887 = scalar_lea.vmem [#allocation14], %s886
          %889 = vsyncadd %s885, 0
          %s890 = scalar_lea.hbm %s15, %s55
          %s892 = sshll.u32 %s890, 4
          %s893 = int_to_ptr.hbm [resolvable:$true] %s892
          %s894 = sshll.u32 %s887, 4
          %s895 = int_to_ptr.vmem [resolvable:$true] %s894
          %897 = dma.hbm_to_vmem [thread:$0]  %s893, 16, %s895, %s885
        $region80: #{tpu_custom_call.1} parent=15 // pred_fallthru
          _
        // Predicated region
        $region81: #{tpu_custom_call.1} parent=15 // pred_check
          %p898 = pneg %p495
        $region82: #{tpu_custom_call.1} parent=15 // pred_check_branch
          %900 = sbr.rel (%p898) target = $region84
        $region83: #{tpu_custom_call.1} parent=15 // pred_region
          %p901 = scmp.lt.s32.totalorder %s55, 1
          %s902 = scalar_select %p901, %s55, 1
          %s903 = scalar_lea.vmem %s16, %s902
        $region84: #{tpu_custom_call.1} parent=15 // pred_fallthru
          _
        // Predicated region
        $region85: #{tpu_custom_call.1} parent=15 // pred_check
          %p904 = pneg %p521
        $region86: #{tpu_custom_call.1} parent=15 // pred_check_branch
          %906 = sbr.rel (%p904) target = $region88
        $region87: #{tpu_custom_call.1} parent=15 // pred_region
          %s907 = sand.u32 %s47, 1
          %s908 = scalar_lea.sflag [#allocation16], %s907
          %s909 = sand.u32 %s511, 1
          %s910 = smul.addr %s909, 16
          %s911 = scalar_lea.vmem [#allocation15], %s910
          %913 = vsyncadd %s908, 0
          %s914 = smul.addr %s55, 4
          %s915 = smul.addr %s914, 4
          %s916 = scalar_lea.hbm %s17, %s915
          %s917 = sshll.u32 %s916, 4
          %s918 = int_to_ptr.hbm [resolvable:$true] %s917
          %s919 = sshll.u32 %s911, 4
          %s920 = int_to_ptr.vmem [resolvable:$true] %s919
          %925 = dma.hbm_to_vmem [thread:$0]  %s918, 256, %s920, %s908, 64, 64, 4
        $region88: #{tpu_custom_call.1} parent=15 // pred_fallthru
          _
        // Predicated region
        $region89: #{tpu_custom_call.1} parent=15 // pred_check
          %p926 = pneg %p547
        $region90: #{tpu_custom_call.1} parent=15 // pred_check_branch
          %928 = sbr.rel (%p926) target = $region92
        $region91: #{tpu_custom_call.1} parent=15 // pred_region
          %p929 = scmp.lt.s32.totalorder %s55, 1
          %s930 = scalar_select %p929, %s55, 1
          %s931 = scalar_lea.vmem %s18, %s930
        $region92: #{tpu_custom_call.1} parent=15 // pred_fallthru
          _
        // Predicated region
        $region93: #{tpu_custom_call.1} parent=15 // pred_check
          %p932 = pneg %p573
        $region94: #{tpu_custom_call.1} parent=15 // pred_check_branch
          %934 = sbr.rel (%p932) target = $region96
        $region95: #{tpu_custom_call.1} parent=15 // pred_region
          %p935 = scmp.lt.s32.totalorder %s55, 1
          %s936 = scalar_select %p935, %s55, 1
          %s937 = smul.addr %s936, 8
          %s938 = smul.addr %s937, 4
          %s939 = scalar_lea.vmem %s19, %s938
        $region96: #{tpu_custom_call.1} parent=15 // pred_fallthru
          _
        // Predicated region
        $region97: #{tpu_custom_call.1} parent=15 // pred_check
          %p940 = pneg %p599
        $region98: #{tpu_custom_call.1} parent=15 // pred_check_branch
          %942 = sbr.rel (%p940) target = $region100
        $region99: #{tpu_custom_call.1} parent=15 // pred_region
          %p943 = scmp.lt.s32.totalorder %s55, 1
          %s944 = scalar_select %p943, %s55, 1
          %s945 = scalar_lea.vmem %s20, %s944
        $region100: #{tpu_custom_call.1} parent=15 // pred_fallthru
          _
        // Predicated region
        $region101: #{tpu_custom_call.1} parent=15 // pred_check
          %p946 = pneg %p625
        $region102: #{tpu_custom_call.1} parent=15 // pred_check_branch
          %948 = sbr.rel (%p946) target = $region104
        $region103: #{tpu_custom_call.1} parent=15 // pred_region
          %s949 = sand.u32 %s47, 1
          %s950 = scalar_lea.sflag [#allocation16], %s949
          %s951 = sand.u32 %s615, 1
          %s952 = scalar_lea.vmem [#allocation17], %s951
          %954 = vsyncadd %s950, 0
          %s955 = scalar_lea.hbm %s21, %s55
          %s957 = sshll.u32 %s955, 4
          %s958 = int_to_ptr.hbm [resolvable:$true] %s957
          %s959 = sshll.u32 %s952, 4
          %s960 = int_to_ptr.vmem [resolvable:$true] %s959
          %962 = dma.hbm_to_vmem [thread:$0]  %s958, 16, %s960, %s950
        $region104: #{tpu_custom_call.1} parent=15 // pred_fallthru
          _
        // Predicated region
        $region105: #{tpu_custom_call.1} parent=15 // pred_check
          %p963 = pneg %p651
        $region106: #{tpu_custom_call.1} parent=15 // pred_check_branch
          %965 = sbr.rel (%p963) target = $region108
        $region107: #{tpu_custom_call.1} parent=15 // pred_region
          %p966 = scmp.lt.s32.totalorder %s55, 1
          %s967 = scalar_select %p966, %s55, 1
          %s968 = scalar_lea.vmem %s22, %s967
        $region108: #{tpu_custom_call.1} parent=15 // pred_fallthru
          _
      $region16: #{tpu_custom_call.1} parent=5 // pred_fallthru
        _
      %p969 = scmp.le.s32.totalorder 1, %s47
      %p970 = scmp.lt.s32.totalorder %s47, 5
      %p971 = pnand %p969, %p970
      %p972 = pneg %p971
      // Predicated region
      $region109: #{tpu_custom_call.1} parent=5 // pred_check
        _
      $region110: #{tpu_custom_call.1} parent=5 // pred_check_branch
        %974 = sbr.rel (%p971) target = $region112
      $region111: #{tpu_custom_call.1} parent=5 // pred_region
        %s975 = ssub.s32 %s47, 1
        %s976 = sand.u32 %s72, 1
        %s977 = scalar_lea.sflag [#allocation4], %s976
        %s978 = sand.u32 %s72, 1
        %s979 = smul.addr %s978, 8
        %s980 = scalar_lea.vmem [#allocation3], %s979
        // Predicated region
        $region113: #{tpu_custom_call.1} parent=111 // pred_check
          %p981 = pneg %p85
        $region114: #{tpu_custom_call.1} parent=111 // pred_check_branch
          %983 = sbr.rel (%p981) target = $region116
        $region115: #{tpu_custom_call.1} parent=111 // pred_region
          %985 = dma.done %s977, 128
        $region116: #{tpu_custom_call.1} parent=111 // pred_fallthru
          _
        %s986 = sand.u32 %s52, 1
        %s987 = scalar_lea.sflag [#allocation7], %s986
        %s988 = sand.u32 %s98, 1
        %s989 = smul.addr %s988, 8
        %s990 = scalar_lea.vmem [#allocation6], %s989
        // Predicated region
        $region117: #{tpu_custom_call.1} parent=111 // pred_check
          %p991 = pneg %p111
        $region118: #{tpu_custom_call.1} parent=111 // pred_check_branch
          %993 = sbr.rel (%p991) target = $region120
        $region119: #{tpu_custom_call.1} parent=111 // pred_region
          %995 = dma.done %s987, 128
        $region120: #{tpu_custom_call.1} parent=111 // pred_fallthru
          _
        %s996 = sand.u32 %s52, 1
        %s997 = scalar_lea.sflag [#allocation7], %s996
        %s998 = sand.u32 %s124, 1
        %s999 = scalar_lea.vmem [#allocation8], %s998
        // Predicated region
        $region121: #{tpu_custom_call.1} parent=111 // pred_check
          %p1000 = pneg %p137
        $region122: #{tpu_custom_call.1} parent=111 // pred_check_branch
          %1002 = sbr.rel (%p1000) target = $region124
        $region123: #{tpu_custom_call.1} parent=111 // pred_region
          %1004 = dma.done %s997, 16
        $region124: #{tpu_custom_call.1} parent=111 // pred_fallthru
          _
        %s1005 = sand.u32 %s52, 1
        %s1006 = scalar_lea.sflag [#allocation10], %s1005
        %s1007 = sand.u32 %s254, 1
        %s1008 = scalar_lea.vmem [#allocation9], %s1007
        // Predicated region
        $region125: #{tpu_custom_call.1} parent=111 // pred_check
          %p1009 = pneg %p267
        $region126: #{tpu_custom_call.1} parent=111 // pred_check_branch
          %1011 = sbr.rel (%p1009) target = $region128
        $region127: #{tpu_custom_call.1} parent=111 // pred_region
          %1013 = dma.done %s1006, 16
        $region128: #{tpu_custom_call.1} parent=111 // pred_fallthru
          _
        %s1014 = sand.u32 %s52, 1
        %s1015 = scalar_lea.sflag [#allocation10], %s1014
        %s1016 = sand.u32 %s358, 1
        %s1017 = smul.addr %s1016, 16
        %s1018 = scalar_lea.vmem [#allocation11], %s1017
        // Predicated region
        $region129: #{tpu_custom_call.1} parent=111 // pred_check
          %p1019 = pneg %p371
        $region130: #{tpu_custom_call.1} parent=111 // pred_check_branch
          %1021 = sbr.rel (%p1019) target = $region132
        $region131: #{tpu_custom_call.1} parent=111 // pred_region
          %1023 = dma.done %s1015, 256
        $region132: #{tpu_custom_call.1} parent=111 // pred_fallthru
          _
        %s1024 = sand.u32 %s52, 1
        %s1025 = scalar_lea.sflag [#allocation13], %s1024
        %s1026 = sand.u32 %s410, 1
        %s1027 = smul.addr %s1026, 16
        %s1028 = scalar_lea.vmem [#allocation12], %s1027
        // Predicated region
        $region133: #{tpu_custom_call.1} parent=111 // pred_check
          %p1029 = pneg %p423
        $region134: #{tpu_custom_call.1} parent=111 // pred_check_branch
          %1031 = sbr.rel (%p1029) target = $region136
        $region135: #{tpu_custom_call.1} parent=111 // pred_region
          %1033 = dma.done %s1025, 256
        $region136: #{tpu_custom_call.1} parent=111 // pred_fallthru
          _
        %s1034 = sand.u32 %s52, 1
        %s1035 = scalar_lea.sflag [#allocation13], %s1034
        %s1036 = sand.u32 %s462, 1
        %s1037 = scalar_lea.vmem [#allocation14], %s1036
        // Predicated region
        $region137: #{tpu_custom_call.1} parent=111 // pred_check
          %p1038 = pneg %p475
        $region138: #{tpu_custom_call.1} parent=111 // pred_check_branch
          %1040 = sbr.rel (%p1038) target = $region140
        $region139: #{tpu_custom_call.1} parent=111 // pred_region
          %1042 = dma.done %s1035, 16
        $region140: #{tpu_custom_call.1} parent=111 // pred_fallthru
          _
        %s1043 = sand.u32 %s52, 1
        %s1044 = scalar_lea.sflag [#allocation16], %s1043
        %s1045 = sand.u32 %s514, 1
        %s1046 = smul.addr %s1045, 16
        %s1047 = scalar_lea.vmem [#allocation15], %s1046
        // Predicated region
        $region141: #{tpu_custom_call.1} parent=111 // pred_check
          %p1048 = pneg %p527
        $region142: #{tpu_custom_call.1} parent=111 // pred_check_branch
          %1050 = sbr.rel (%p1048) target = $region144
        $region143: #{tpu_custom_call.1} parent=111 // pred_region
          %1052 = dma.done %s1044, 256
        $region144: #{tpu_custom_call.1} parent=111 // pred_fallthru
          _
        %s1053 = sand.u32 %s52, 1
        %s1054 = scalar_lea.sflag [#allocation16], %s1053
        %s1055 = sand.u32 %s618, 1
        %s1056 = scalar_lea.vmem [#allocation17], %s1055
        // Predicated region
        $region145: #{tpu_custom_call.1} parent=111 // pred_check
          %p1057 = pneg %p631
        $region146: #{tpu_custom_call.1} parent=111 // pred_check_branch
          %1059 = sbr.rel (%p1057) target = $region148
        $region147: #{tpu_custom_call.1} parent=111 // pred_region
          %1061 = dma.done %s1054, 16
        $region148: #{tpu_custom_call.1} parent=111 // pred_fallthru
          _
        %s1062 = sand.u32 %s72, 1
        %s1063 = scalar_lea.sflag [#allocation4], %s1062
        %s1064 = sand.u32 %s72, 1
        %s1065 = smul.addr %s1064, 8
        %s1066 = scalar_lea.vmem [#allocation3], %s1065
        %p1067 = pneg %p85
        %p1068 = pneg %p82
        %s1069 = sand.u32 %s52, 1
        %s1070 = scalar_lea.sflag [#allocation7], %s1069
        %s1071 = sand.u32 %s98, 1
        %s1072 = smul.addr %s1071, 8
        %s1073 = scalar_lea.vmem [#allocation6], %s1072
        %p1074 = pneg %p111
        %p1075 = pneg %p108
        %s1076 = sand.u32 %s52, 1
        %s1077 = scalar_lea.sflag [#allocation7], %s1076
        %s1078 = sand.u32 %s124, 1
        %s1079 = scalar_lea.vmem [#allocation8], %s1078
        %p1080 = pneg %p137
        %p1081 = pneg %p134
        %p1082 = scmp.lt.s32.totalorder %s57, 1
        %s1083 = scalar_select %p1082, %s57, 1
        %s1084 = smul.addr %s1083, 4
        %s1085 = smul.addr %s1084, 4
        %s1086 = scalar_lea.vmem %s3, %s1085
        %p1087 = pneg %p163
        %p1088 = pneg %p160
        %p1089 = scmp.lt.s32.totalorder %s57, 1
        %s1090 = scalar_select %p1089, %s57, 1
        %s1091 = scalar_lea.vmem %s4, %s1090
        %p1092 = pneg %p189
        %p1093 = pneg %p186
        %p1094 = scmp.lt.s32.totalorder %s57, 1
        %s1095 = scalar_select %p1094, %s57, 1
        %s1096 = smul.addr %s1095, 4
        %s1097 = smul.addr %s1096, 4
        %s1098 = scalar_lea.vmem %s5, %s1097
        %p1099 = pneg %p215
        %p1100 = pneg %p212
        %p1101 = scmp.lt.s32.totalorder %s57, 1
        %s1102 = scalar_select %p1101, %s57, 1
        %s1103 = scalar_lea.vmem %s6, %s1102
        %p1104 = pneg %p241
        %p1105 = pneg %p238
        %s1106 = sand.u32 %s52, 1
        %s1107 = scalar_lea.sflag [#allocation10], %s1106
        %s1108 = sand.u32 %s254, 1
        %s1109 = scalar_lea.vmem [#allocation9], %s1108
        %p1110 = pneg %p267
        %p1111 = pneg %p264
        %p1112 = scmp.lt.s32.totalorder %s57, 1
        %s1113 = scalar_select %p1112, %s57, 1
        %s1114 = scalar_lea.vmem %s8, %s1113
        %p1115 = pneg %p293
        %p1116 = pneg %p290
        %p1117 = scmp.lt.s32.totalorder %s57, 1
        %s1118 = scalar_select %p1117, %s57, 1
        %s1119 = smul.addr %s1118, 4
        %s1120 = smul.addr %s1119, 4
        %s1121 = scalar_lea.vmem %s9, %s1120
        %p1122 = pneg %p319
        %p1123 = pneg %p316
        %p1124 = scmp.lt.s32.totalorder %s57, 1
        %s1125 = scalar_select %p1124, %s57, 1
        %s1126 = scalar_lea.vmem %s10, %s1125
        %p1127 = pneg %p345
        %p1128 = pneg %p342
        %s1129 = sand.u32 %s52, 1
        %s1130 = scalar_lea.sflag [#allocation10], %s1129
        %s1131 = sand.u32 %s358, 1
        %s1132 = smul.addr %s1131, 16
        %s1133 = scalar_lea.vmem [#allocation11], %s1132
        %p1134 = pneg %p371
        %p1135 = pneg %p368
        %p1136 = scmp.lt.s32.totalorder %s57, 1
        %s1137 = scalar_select %p1136, %s57, 1
        %s1138 = scalar_lea.vmem %s12, %s1137
        %p1139 = pneg %p397
        %p1140 = pneg %p394
        %s1141 = sand.u32 %s52, 1
        %s1142 = scalar_lea.sflag [#allocation13], %s1141
        %s1143 = sand.u32 %s410, 1
        %s1144 = smul.addr %s1143, 16
        %s1145 = scalar_lea.vmem [#allocation12], %s1144
        %p1146 = pneg %p423
        %p1147 = pneg %p420
        %p1148 = scmp.lt.s32.totalorder %s57, 1
        %s1149 = scalar_select %p1148, %s57, 1
        %s1150 = scalar_lea.vmem %s14, %s1149
        %p1151 = pneg %p449
        %p1152 = pneg %p446
        %s1153 = sand.u32 %s52, 1
        %s1154 = scalar_lea.sflag [#allocation13], %s1153
        %s1155 = sand.u32 %s462, 1
        %s1156 = scalar_lea.vmem [#allocation14], %s1155
        %p1157 = pneg %p475
        %p1158 = pneg %p472
        %p1159 = scmp.lt.s32.totalorder %s57, 1
        %s1160 = scalar_select %p1159, %s57, 1
        %s1161 = scalar_lea.vmem %s16, %s1160
        %p1162 = pneg %p501
        %p1163 = pneg %p498
        %s1164 = sand.u32 %s52, 1
        %s1165 = scalar_lea.sflag [#allocation16], %s1164
        %s1166 = sand.u32 %s514, 1
        %s1167 = smul.addr %s1166, 16
        %s1168 = scalar_lea.vmem [#allocation15], %s1167
        %p1169 = pneg %p527
        %p1170 = pneg %p524
        %p1171 = scmp.lt.s32.totalorder %s57, 1
        %s1172 = scalar_select %p1171, %s57, 1
        %s1173 = scalar_lea.vmem %s18, %s1172
        %p1174 = pneg %p553
        %p1175 = pneg %p550
        %p1176 = scmp.lt.s32.totalorder %s57, 1
        %s1177 = scalar_select %p1176, %s57, 1
        %s1178 = smul.addr %s1177, 8
        %s1179 = smul.addr %s1178, 4
        %s1180 = scalar_lea.vmem %s19, %s1179
        %p1181 = pneg %p579
        %p1182 = pneg %p576
        %p1183 = scmp.lt.s32.totalorder %s57, 1
        %s1184 = scalar_select %p1183, %s57, 1
        %s1185 = scalar_lea.vmem %s20, %s1184
        %p1186 = pneg %p605
        %p1187 = pneg %p602
        %s1188 = sand.u32 %s52, 1
        %s1189 = scalar_lea.sflag [#allocation16], %s1188
        %s1190 = sand.u32 %s618, 1
        %s1191 = scalar_lea.vmem [#allocation17], %s1190
        %p1192 = pneg %p631
        %p1193 = pneg %p628
        %p1194 = scmp.lt.s32.totalorder %s57, 1
        %s1195 = scalar_select %p1194, %s57, 1
        %s1196 = scalar_lea.vmem %s22, %s1195
        %p1197 = pneg %p657
        %p1198 = pneg %p654
        %p1199 = pneg %p683
        %p1200 = pneg %p680
        %s1201 = sand.u32 %s670, 1
        %s1202 = scalar_lea.sflag [#allocation5], %s1201
        %s1203 = sand.u32 %s670, 1
        %s1204 = smul.addr %s1203, 8
        %s1205 = scalar_lea.vmem [#allocation18], %s1204
        %p1206 = scmp.lt.s32.totalorder %s57, 1
        %s1207 = scalar_select %p1206, %s57, 1
        %s1208 = smul.addr %s1207, 4
        %s1209 = smul.addr %s1208, 4
        %s1210 = scalar_lea.vmem %s3, %s1209
        %p1211 = scmp.lt.s32.totalorder %s57, 1
        %s1212 = scalar_select %p1211, %s57, 1
        %s1213 = scalar_lea.vmem %s4, %s1212
        %p1214 = scmp.lt.s32.totalorder %s57, 1
        %s1215 = scalar_select %p1214, %s57, 1
        %s1216 = smul.addr %s1215, 4
        %s1217 = smul.addr %s1216, 4
        %s1218 = scalar_lea.vmem %s5, %s1217
        %p1219 = scmp.lt.s32.totalorder %s57, 1
        %s1220 = scalar_select %p1219, %s57, 1
        %s1221 = scalar_lea.vmem %s6, %s1220
        %p1222 = scmp.lt.s32.totalorder %s57, 1
        %s1223 = scalar_select %p1222, %s57, 1
        %s1224 = scalar_lea.vmem %s8, %s1223
        %p1225 = scmp.lt.s32.totalorder %s57, 1
        %s1226 = scalar_select %p1225, %s57, 1
        %s1227 = smul.addr %s1226, 4
        %s1228 = smul.addr %s1227, 4
        %s1229 = scalar_lea.vmem %s9, %s1228
        %p1230 = scmp.lt.s32.totalorder %s57, 1
        %s1231 = scalar_select %p1230, %s57, 1
        %s1232 = scalar_lea.vmem %s10, %s1231
        %p1233 = scmp.lt.s32.totalorder %s57, 1
        %s1234 = scalar_select %p1233, %s57, 1
        %s1235 = scalar_lea.vmem %s12, %s1234
        %p1236 = scmp.lt.s32.totalorder %s57, 1
        %s1237 = scalar_select %p1236, %s57, 1
        %s1238 = scalar_lea.vmem %s14, %s1237
        %p1239 = scmp.lt.s32.totalorder %s57, 1
        %s1240 = scalar_select %p1239, %s57, 1
        %s1241 = scalar_lea.vmem %s16, %s1240
        %p1242 = scmp.lt.s32.totalorder %s57, 1
        %s1243 = scalar_select %p1242, %s57, 1
        %s1244 = scalar_lea.vmem %s18, %s1243
        %p1245 = scmp.lt.s32.totalorder %s57, 1
        %s1246 = scalar_select %p1245, %s57, 1
        %s1247 = smul.addr %s1246, 8
        %s1248 = smul.addr %s1247, 4
        %s1249 = scalar_lea.vmem %s19, %s1248
        %p1250 = scmp.lt.s32.totalorder %s57, 1
        %s1251 = scalar_select %p1250, %s57, 1
        %s1252 = scalar_lea.vmem %s20, %s1251
        %p1253 = scmp.lt.s32.totalorder %s57, 1
        %s1254 = scalar_select %p1253, %s57, 1
        %s1255 = scalar_lea.vmem %s22, %s1254
        %p1257 = scmp.eq.s32.totalorder %s57, 0
        // Predicated region
        $region149: #{tpu_custom_call.1} parent=111 // pred_check
          %p1258 = pneg %p1257
        $region150: #{tpu_custom_call.1} parent=111 // pred_check_branch
          %1260 = sbr.rel (%p1258) target = $region152
        $region151: #{tpu_custom_call.1} parent=111 // pred_region
          %v1261 = vld [vmem:[%s980] sm:$0xff]
          %vm1262 = vcmask 261120
          %1263 = vst.msk [vmem:[#allocation2] sm:$0xff] %vm1262, %v1261
        $region152: #{tpu_custom_call.1} parent=111 // pred_fallthru
          _
        %v1264 = vld [vmem:[#allocation2] sm:$0xff]
        %v1265 = vpack.c.bf16 %v1264, %v1264
        %v1266 = vld [vmem:[%s1210] sm:$0xf]
        %v1267 = vld [vmem:[%s1210 + $0x4] sm:$0xf]
        %v1268 = vld [vmem:[%s1210 + $0x8] sm:$0xf]
        %v1269 = vld [vmem:[%s1210 + $0xc] sm:$0xf]
        %v1270 = vld [vmem:[%s1213] sm:$0x1]
        %v1272 = vperm.slane %v1270, 0
        %v1278 = vunpack.c.l.b16 %v1266
        %v1279 = vunpack.c.l.b16 %v1267
        %v1280 = vunpack.c.l.b16 %v1268
        %v1281 = vunpack.c.l.b16 %v1269
        %v1282 = vpack.c.b16 %v1279, %v1278
        %v1283 = vpack.c.b16 %v1281, %v1280
        %vm1286 = vcmask 261120
        %v1288 = vsel %vm1286, %v1265, 0
        %1290 = vmatpush.bf16.msra.mxu0 0
        %1291 = vmatpush.bf16.msra.mxu0 0
        %1292 = vmatpush.bf16.msra.mxu0 0
        %1293 = vmatpush.bf16.msra.mxu0 0
        %1294 = vmatpush.bf16.msra.mxu0 0
        %1295 = vmatpush.bf16.msra.mxu0 0
        %1296 = vmatpush.bf16.msra.mxu0 %v1283
        %1297 = vmatpush.bf16.msra.mxu0 %v1282
        %1298 = vmatmul.bf16.gmra.mxu0 %v1288
        %v1299 = vpop.f32.mrf.mxu0
        %v1300 = vadd.f32 %v1272, %v1299
        %v1301 = vpop.f32.mrf.mxu0
        %1302 = vdwg.mxu0
        %v1303 = vlaneseq
        %v1304 = vshrl.u32 %v1303, 7
        %v1305 = vlaneseq
        %v1306 = vand.u32 %v1305, 127
        %vm1307 = vcmp.le.s32.totalorder %v1306, %v1304
        %v1308 = vpack.c.bf16 %v1300, %v1300
        %1310 = vrot.lane.b32.xlu0 %v1308, 96
        %v1311 = vpop.permute.xlu0 %1310
        %vm1312 = vcmask 130048
        %v1314 = vsel %vm1312, %v1308, 0
        %v1317 = vsel %vm1312, %v1311, 0
        %1319 = vmatpush.bf16.xpose.msra.mxu0 0
        %1320 = vmatpush.bf16.xpose.msra.mxu0 0
        %1321 = vmatpush.bf16.xpose.msra.mxu0 0
        %1322 = vmatpush.bf16.xpose.msra.mxu0 0
        %1323 = vmatpush.bf16.xpose.msra.mxu0 0
        %1324 = vmatpush.bf16.xpose.msra.mxu0 0
        %1325 = vmatpush.bf16.xpose.msra.mxu0 0
        %1326 = vmatpush.bf16.xpose.msra.mxu0 %v1317
        %1327 = vmatmul.bf16.gmra.mxu0 %v1314
        %v1328 = vpop.f32.mrf.mxu0
        %v1329 = vadd.f32 0.0, %v1328
        %v1330 = vpop.f32.mrf.mxu0
        %1331 = vdwg.mxu0
        %v1332 = vmul.f32 %v1329, 0.25
        %v1333 = vsel %vm1307, %v1332, -1e+30
        %vm1334 = vcmask 64512
        %v1335 = vsel %vm1334, %v1333, -inf
        %1336 = vmax.xlane.f32.xlu0 %v1335
        %v1337 = vpop.xlane.xlu0 %1336
        %v1338 = vsub.f32 %v1333, %v1337
        %v1339 = vmul.f32 %v1338, 1.442695
        %v1340 = vpow.pop %v1339
        %v1341 = vsel %vm1334, %v1340, 0.0
        %1342 = vadd.xlane.f32.xlu0 %v1341
        %v1343 = vpop.xlane.xlu0 %1342
        %v1344 = vrcp.pop %v1343
        %v1345 = vmul.f32 %v1340, %v1344
        %v1346 = vpack.c.bf16 %v1345, %v1345
        %1347 = vrot.lane.b32.xlu0 %v1308, 64
        %v1348 = vpop.permute.xlu0 %1347
        %v1350 = vsel %vm1334, %v1346, 0
        %vm1352 = vcmask 1043456
        %v1354 = vsel %vm1352, %v1348, 0
        %1356 = vmatpush.bf16.msra.mxu0 0
        %1357 = vmatpush.bf16.msra.mxu0 0
        %1358 = vmatpush.bf16.msra.mxu0 0
        %1359 = vmatpush.bf16.msra.mxu0 0
        %1360 = vmatpush.bf16.msra.mxu0 0
        %1361 = vmatpush.bf16.msra.mxu0 0
        %1362 = vmatpush.bf16.msra.mxu0 0
        %1363 = vmatpush.bf16.msra.mxu0 %v1354
        %1364 = vmatmul.bf16.gmra.mxu0 %v1350
        %v1365 = vpop.f32.mrf.mxu0
        %v1366 = vadd.f32 0.0, %v1365
        %v1367 = vpop.f32.mrf.mxu0
        %1368 = vdwg.mxu0
        %1369 = vrot.lane.b32.xlu0 %v1308, 112
        %v1370 = vpop.permute.xlu0 %1369
        %1371 = vrot.lane.b32.xlu0 %v1308, 80
        %v1372 = vpop.permute.xlu0 %1371
        %v1374 = vsel %vm1312, %v1370, 0
        %v1377 = vsel %vm1312, %v1372, 0
        %1379 = vmatpush.bf16.xpose.msra.mxu0 0
        %1380 = vmatpush.bf16.xpose.msra.mxu0 0
        %1381 = vmatpush.bf16.xpose.msra.mxu0 0
        %1382 = vmatpush.bf16.xpose.msra.mxu0 0
        %1383 = vmatpush.bf16.xpose.msra.mxu0 0
        %1384 = vmatpush.bf16.xpose.msra.mxu0 0
        %1385 = vmatpush.bf16.xpose.msra.mxu0 0
        %1386 = vmatpush.bf16.xpose.msra.mxu0 %v1377
        %1387 = vmatmul.bf16.gmra.mxu0 %v1374
        %v1388 = vpop.f32.mrf.mxu0
        %v1389 = vadd.f32 0.0, %v1388
        %v1390 = vpop.f32.mrf.mxu0
        %1391 = vdwg.mxu0
        %v1392 = vmul.f32 %v1389, 0.25
        %v1393 = vsel %vm1307, %v1392, -1e+30
        %v1394 = vsel %vm1334, %v1393, -inf
        %1395 = vmax.xlane.f32.xlu0 %v1394
        %v1396 = vpop.xlane.xlu0 %1395
        %v1397 = vsub.f32 %v1393, %v1396
        %v1398 = vmul.f32 %v1397, 1.442695
        %v1399 = vpow.pop %v1398
        %v1400 = vsel %vm1334, %v1399, 0.0
        %1401 = vadd.xlane.f32.xlu0 %v1400
        %v1402 = vpop.xlane.xlu0 %1401
        %v1403 = vrcp.pop %v1402
        %v1404 = vmul.f32 %v1399, %v1403
        %v1405 = vpack.c.bf16 %v1404, %v1404
        %1406 = vrot.lane.b32.xlu0 %v1308, 48
        %v1407 = vpop.permute.xlu0 %1406
        %v1409 = vsel %vm1334, %v1405, 0
        %v1412 = vsel %vm1352, %v1407, 0
        %1414 = vmatpush.bf16.msra.mxu0 0
        %1415 = vmatpush.bf16.msra.mxu0 0
        %1416 = vmatpush.bf16.msra.mxu0 0
        %1417 = vmatpush.bf16.msra.mxu0 0
        %1418 = vmatpush.bf16.msra.mxu0 0
        %1419 = vmatpush.bf16.msra.mxu0 0
        %1420 = vmatpush.bf16.msra.mxu0 0
        %1421 = vmatpush.bf16.msra.mxu0 %v1412
        %1422 = vmatmul.bf16.gmra.mxu0 %v1409
        %v1423 = vpop.f32.mrf.mxu0
        %v1424 = vadd.f32 0.0, %v1423
        %v1425 = vpop.f32.mrf.mxu0
        %1426 = vdwg.mxu0
        %1428 = vrot.lane.b32.xlu0 %v1424, 16
        %v1429 = vpop.permute.xlu0 %1428
        %v1431 = vsel %vm1312, %v1366, %v1429
        %v1432 = vpack.c.bf16 %v1431, %v1431
        %v1433 = vld [vmem:[%s1218] sm:$0xf]
        %v1434 = vld [vmem:[%s1218 + $0x4] sm:$0xf]
        %v1435 = vld [vmem:[%s1218 + $0x8] sm:$0xf]
        %v1436 = vld [vmem:[%s1218 + $0xc] sm:$0xf]
        %v1437 = vld [vmem:[%s1221] sm:$0x1]
        %v1439 = vperm.slane %v1437, 0
        %v1445 = vunpack.c.l.b16 %v1433
        %v1446 = vunpack.c.l.b16 %v1434
        %v1447 = vunpack.c.l.b16 %v1435
        %v1448 = vunpack.c.l.b16 %v1436
        %v1449 = vpack.c.b16 %v1446, %v1445
        %v1450 = vpack.c.b16 %v1448, %v1447
        %v1454 = vsel %vm1286, %v1432, 0
        %1456 = vmatpush.bf16.msra.mxu0 0
        %1457 = vmatpush.bf16.msra.mxu0 0
        %1458 = vmatpush.bf16.msra.mxu0 0
        %1459 = vmatpush.bf16.msra.mxu0 0
        %1460 = vmatpush.bf16.msra.mxu0 0
        %1461 = vmatpush.bf16.msra.mxu0 0
        %1462 = vmatpush.bf16.msra.mxu0 %v1450
        %1463 = vmatpush.bf16.msra.mxu0 %v1449
        %1464 = vmatmul.bf16.gmra.mxu0 %v1454
        %v1465 = vpop.f32.mrf.mxu0
        %v1466 = vadd.f32 %v1439, %v1465
        %v1467 = vpop.f32.mrf.mxu0
        %1468 = vdwg.mxu0
        %v1469 = vadd.f32 %v1264, %v1466
        %v1470 = vld [vmem:[%s1008] sm:$0x1]
        %v1471 = vld [vmem:[%s1224] sm:$0x1]
        %v1472 = vsel %vm1286, %v1469, 0.0
        %1473 = vadd.xlane.f32.xlu0 %v1472
        %v1474 = vpop.xlane.xlu0 %1473
        %v1475 = vrcp.pop 32.0
        %v1476 = vmul.f32 32.0, %v1475
        %v1477 = vsub.f32 1.0, %v1476
        %v1478 = vmul.f32 %v1475, %v1477
        %v1479 = vadd.f32 %v1475, %v1478
        %vm1480 = vweird.f32 %v1475
        %v1481 = vsel %vm1480, %v1475, %v1479
        %v1482 = vmul.f32 %v1474, %v1481
        %v1483 = vsub.f32 %v1469, %v1482
        %v1484 = vmul.f32 %v1483, %v1483
        %v1485 = vsel %vm1286, %v1484, 0.0
        %1486 = vadd.xlane.f32.xlu0 %v1485
        %v1487 = vpop.xlane.xlu0 %1486
        %v1488 = vmul.f32 %v1487, %v1481
        %v1489 = vadd.f32 %v1488, 1e-05
        %v1490 = vrsqrt.pop %v1489
        %v1491 = vmul.f32 %v1490, %v1489
        %v1492 = vmul.f32 %v1491, %v1490
        %v1493 = vmul.f32 0.5, %v1492
        %v1494 = vsub.f32 1.5, %v1493
        %v1495 = vmul.f32 %v1490, %v1494
        %vm1496 = vweird.f32 %v1489
        %vm1497 = vweird.f32 %v1490
        %vm1498 = vmor %vm1496, %vm1497
        %v1499 = vsel %vm1498, %v1490, %v1495
        %v1500 = vmul.f32 %v1483, %v1499
        %v1502 = vperm.slane %v1470, 0
        %v1504 = vmul.f32 %v1500, %v1502
        %v1506 = vperm.slane %v1471, 0
        %v1508 = vadd.f32 %v1504, %v1506
        %v1509 = vld [vmem:[%s990] sm:$0xf]
        %v1510 = vld [vmem:[%s990 + $0x4] sm:$0xf]
        %v1511 = vpack.c.bf16 %v1508, %v1508
        %v1512 = vld [vmem:[%s1229] sm:$0xf]
        %v1513 = vld [vmem:[%s1229 + $0x4] sm:$0xf]
        %v1514 = vld [vmem:[%s1229 + $0x8] sm:$0xf]
        %v1515 = vld [vmem:[%s1229 + $0xc] sm:$0xf]
        %v1516 = vld [vmem:[%s1232] sm:$0x1]
        %v1518 = vperm.slane %v1516, 0
        %v1524 = vunpack.c.l.b16 %v1512
        %v1525 = vunpack.c.l.b16 %v1513
        %v1526 = vunpack.c.l.b16 %v1514
        %v1527 = vunpack.c.l.b16 %v1515
        %v1528 = vpack.c.b16 %v1525, %v1524
        %v1529 = vpack.c.b16 %v1527, %v1526
        %v1533 = vsel %vm1286, %v1511, 0
        %1535 = vmatpush.bf16.msra.mxu0 0
        %1536 = vmatpush.bf16.msra.mxu0 0
        %1537 = vmatpush.bf16.msra.mxu0 0
        %1538 = vmatpush.bf16.msra.mxu0 0
        %1539 = vmatpush.bf16.msra.mxu0 0
        %1540 = vmatpush.bf16.msra.mxu0 0
        %1541 = vmatpush.bf16.msra.mxu0 %v1529
        %1542 = vmatpush.bf16.msra.mxu0 %v1528
        %1543 = vmatmul.bf16.gmra.mxu0 %v1533
        %v1544 = vpop.f32.mrf.mxu0
        %v1545 = vadd.f32 %v1518, %v1544
        %v1546 = vpop.f32.mrf.mxu0
        %1547 = vdwg.mxu0
        %v1548 = vld [vmem:[%s1018] sm:$0xf]
        %v1549 = vld [vmem:[%s1018 + $0x4] sm:$0xf]
        %v1550 = vld [vmem:[%s1018 + $0x8] sm:$0xf]
        %v1551 = vld [vmem:[%s1018 + $0xc] sm:$0xf]
        %v1552 = vld [vmem:[%s1235] sm:$0x1]
        %v1554 = vperm.slane %v1552, 0
        %v1558 = vunpack.c.l.b16 %v1509
        %v1559 = vunpack.c.l.b16 %v1510
        %v1560 = vpack.c.b16 %v1559, %v1558
        %v1565 = vunpack.c.l.b16 %v1548
        %v1566 = vunpack.c.l.b16 %v1549
        %v1567 = vunpack.c.l.b16 %v1550
        %v1568 = vunpack.c.l.b16 %v1551
        %v1569 = vpack.c.b16 %v1566, %v1565
        %v1570 = vpack.c.b16 %v1568, %v1567
        %v1574 = vsel %vm1286, %v1560, 0
        %1576 = vmatpush.bf16.msra.mxu0 0
        %1577 = vmatpush.bf16.msra.mxu0 0
        %1578 = vmatpush.bf16.msra.mxu0 0
        %1579 = vmatpush.bf16.msra.mxu0 0
        %1580 = vmatpush.bf16.msra.mxu0 0
        %1581 = vmatpush.bf16.msra.mxu0 0
        %1582 = vmatpush.bf16.msra.mxu0 %v1570
        %1583 = vmatpush.bf16.msra.mxu0 %v1569
        %1584 = vmatmul.bf16.gmra.mxu0 %v1574
        %v1585 = vpop.f32.mrf.mxu0
        %v1586 = vadd.f32 %v1554, %v1585
        %v1587 = vpop.f32.mrf.mxu0
        %v1588 = vadd.f32 %v1554, %v1587
        %1589 = vdwg.mxu0
        %v1590 = vld [vmem:[%s999] sm:$0x1]
        %vm1591 = vcmp.gt.f32.partialorder %v1590, 0.0
        %v1592 = vpack.c.bf16 %v1545, %v1545
        %v1593 = vpack.c.bf16 %v1588, %v1586
        %v1595 = vsel %vm1312, %v1592, 0
        %v1598 = vsel %vm1312, %v1593, 0
        %1600 = vmatpush.bf16.xpose.msra.mxu0 0
        %1601 = vmatpush.bf16.xpose.msra.mxu0 0
        %1602 = vmatpush.bf16.xpose.msra.mxu0 0
        %1603 = vmatpush.bf16.xpose.msra.mxu0 0
        %1604 = vmatpush.bf16.xpose.msra.mxu0 0
        %1605 = vmatpush.bf16.xpose.msra.mxu0 0
        %1606 = vmatpush.bf16.xpose.msra.mxu0 0
        %1607 = vmatpush.bf16.xpose.msra.mxu0 %v1598
        %1608 = vmatmul.bf16.gmra.mxu0 %v1595
        %v1609 = vpop.f32.mrf.mxu0
        %v1610 = vadd.f32 0.0, %v1609
        %v1611 = vpop.f32.mrf.mxu0
        %1612 = vdwg.mxu0
        %v1613 = vmul.f32 %v1610, 0.25
        %v1614 = vsel %vm1591, 1, 0
        %v1615 = vperm.slane %v1614, 0
        %vm1616 = vcmp.eq.s32.totalorder %v1615, 1
        %v1617 = vsel %vm1616, %v1613, -1e+30
        %v1618 = vsel %vm1312, %v1617, -inf
        %1619 = vmax.xlane.f32.xlu0 %v1618
        %v1620 = vpop.xlane.xlu0 %1619
        %v1621 = vsub.f32 %v1617, %v1620
        %v1622 = vmul.f32 %v1621, 1.442695
        %v1623 = vpow.pop %v1622
        %v1624 = vsel %vm1312, %v1623, 0.0
        %1625 = vadd.xlane.f32.xlu0 %v1624
        %v1626 = vpop.xlane.xlu0 %1625
        %v1627 = vrcp.pop %v1626
        %v1628 = vmul.f32 %v1623, %v1627
        %v1629 = vpack.c.bf16 %v1628, %v1628
        %1631 = vrot.lane.b32.xlu0 %v1593, 96
        %v1632 = vpop.permute.xlu0 %1631
        %v1635 = vsel %vm1312, %v1629, 0
        %1637 = vmatpush.bf16.msra.mxu0 0
        %1638 = vmatpush.bf16.msra.mxu0 0
        %1639 = vmatpush.bf16.msra.mxu0 0
        %1640 = vmatpush.bf16.msra.mxu0 0
        %1641 = vmatpush.bf16.msra.mxu0 0
        %1642 = vmatpush.bf16.msra.mxu0 0
        %1643 = vmatpush.bf16.msra.mxu0 0
        %1644 = vmatpush.bf16.msra.mxu0 %v1632
        %1645 = vmatmul.bf16.gmra.mxu0 %v1635
        %v1646 = vpop.f32.mrf.mxu0
        %v1647 = vadd.f32 0.0, %v1646
        %v1648 = vpop.f32.mrf.mxu0
        %1649 = vdwg.mxu0
        %1651 = vrot.lane.b32.xlu0 %v1592, 112
        %v1652 = vpop.permute.xlu0 %1651
        %1653 = vrot.lane.b32.xlu0 %v1593, 112
        %v1654 = vpop.permute.xlu0 %1653
        %v1656 = vsel %vm1312, %v1652, 0
        %v1659 = vsel %vm1312, %v1654, 0
        %1661 = vmatpush.bf16.xpose.msra.mxu0 0
        %1662 = vmatpush.bf16.xpose.msra.mxu0 0
        %1663 = vmatpush.bf16.xpose.msra.mxu0 0
        %1664 = vmatpush.bf16.xpose.msra.mxu0 0
        %1665 = vmatpush.bf16.xpose.msra.mxu0 0
        %1666 = vmatpush.bf16.xpose.msra.mxu0 0
        %1667 = vmatpush.bf16.xpose.msra.mxu0 0
        %1668 = vmatpush.bf16.xpose.msra.mxu0 %v1659
        %1669 = vmatmul.bf16.gmra.mxu0 %v1656
        %v1670 = vpop.f32.mrf.mxu0
        %v1671 = vadd.f32 0.0, %v1670
        %v1672 = vpop.f32.mrf.mxu0
        %1673 = vdwg.mxu0
        %v1674 = vmul.f32 %v1671, 0.25
        %v1675 = vsel %vm1616, %v1674, -1e+30
        %v1676 = vsel %vm1312, %v1675, -inf
        %1677 = vmax.xlane.f32.xlu0 %v1676
        %v1678 = vpop.xlane.xlu0 %1677
        %v1679 = vsub.f32 %v1675, %v1678
        %v1680 = vmul.f32 %v1679, 1.442695
        %v1681 = vpow.pop %v1680
        %v1682 = vsel %vm1312, %v1681, 0.0
        %1683 = vadd.xlane.f32.xlu0 %v1682
        %v1684 = vpop.xlane.xlu0 %1683
        %v1685 = vrcp.pop %v1684
        %v1686 = vmul.f32 %v1681, %v1685
        %v1687 = vpack.c.bf16 %v1686, %v1686
        %1688 = vrot.lane.b32.xlu0 %v1593, 80
        %v1689 = vpop.permute.xlu0 %1688
        %v1692 = vsel %vm1312, %v1687, 0
        %1694 = vmatpush.bf16.msra.mxu0 0
        %1695 = vmatpush.bf16.msra.mxu0 0
        %1696 = vmatpush.bf16.msra.mxu0 0
        %1697 = vmatpush.bf16.msra.mxu0 0
        %1698 = vmatpush.bf16.msra.mxu0 0
        %1699 = vmatpush.bf16.msra.mxu0 0
        %1700 = vmatpush.bf16.msra.mxu0 0
        %1701 = vmatpush.bf16.msra.mxu0 %v1689
        %1702 = vmatmul.bf16.gmra.mxu0 %v1692
        %v1703 = vpop.f32.mrf.mxu0
        %v1704 = vadd.f32 0.0, %v1703
        %v1705 = vpop.f32.mrf.mxu0
        %1706 = vdwg.mxu0
        %1708 = vrot.lane.b32.xlu0 %v1704, 16
        %v1709 = vpop.permute.xlu0 %1708
        %v1711 = vsel %vm1312, %v1647, %v1709
        %v1712 = vpack.c.bf16 %v1711, %v1711
        %v1713 = vld [vmem:[%s1028] sm:$0xf]
        %v1714 = vld [vmem:[%s1028 + $0x4] sm:$0xf]
        %v1715 = vld [vmem:[%s1028 + $0x8] sm:$0xf]
        %v1716 = vld [vmem:[%s1028 + $0xc] sm:$0xf]
        %v1717 = vld [vmem:[%s1238] sm:$0x1]
        %v1719 = vperm.slane %v1717, 0
        %v1725 = vunpack.c.l.b16 %v1713
        %v1726 = vunpack.c.l.b16 %v1714
        %v1727 = vunpack.c.l.b16 %v1715
        %v1728 = vunpack.c.l.b16 %v1716
        %v1729 = vpack.c.b16 %v1726, %v1725
        %v1730 = vpack.c.b16 %v1728, %v1727
        %v1734 = vsel %vm1286, %v1712, 0
        %1736 = vmatpush.bf16.msra.mxu0 0
        %1737 = vmatpush.bf16.msra.mxu0 0
        %1738 = vmatpush.bf16.msra.mxu0 0
        %1739 = vmatpush.bf16.msra.mxu0 0
        %1740 = vmatpush.bf16.msra.mxu0 0
        %1741 = vmatpush.bf16.msra.mxu0 0
        %1742 = vmatpush.bf16.msra.mxu0 %v1730
        %1743 = vmatpush.bf16.msra.mxu0 %v1729
        %1744 = vmatmul.bf16.gmra.mxu0 %v1734
        %v1745 = vpop.f32.mrf.mxu0
        %v1746 = vadd.f32 %v1719, %v1745
        %v1747 = vpop.f32.mrf.mxu0
        %1748 = vdwg.mxu0
        %v1749 = vadd.f32 %v1508, %v1746
        %v1750 = vld [vmem:[%s1037] sm:$0x1]
        %v1751 = vld [vmem:[%s1241] sm:$0x1]
        %v1752 = vsel %vm1286, %v1749, 0.0
        %1753 = vadd.xlane.f32.xlu0 %v1752
        %v1754 = vpop.xlane.xlu0 %1753
        %v1755 = vmul.f32 %v1754, %v1481
        %v1756 = vsub.f32 %v1749, %v1755
        %v1757 = vmul.f32 %v1756, %v1756
        %v1758 = vsel %vm1286, %v1757, 0.0
        %1759 = vadd.xlane.f32.xlu0 %v1758
        %v1760 = vpop.xlane.xlu0 %1759
        %v1761 = vmul.f32 %v1760, %v1481
        %v1762 = vadd.f32 %v1761, 1e-05
        %v1763 = vrsqrt.pop %v1762
        %v1764 = vmul.f32 %v1763, %v1762
        %v1765 = vmul.f32 %v1764, %v1763
        %v1766 = vmul.f32 0.5, %v1765
        %v1767 = vsub.f32 1.5, %v1766
        %v1768 = vmul.f32 %v1763, %v1767
        %vm1769 = vweird.f32 %v1762
        %vm1770 = vweird.f32 %v1763
        %vm1771 = vmor %vm1769, %vm1770
        %v1772 = vsel %vm1771, %v1763, %v1768
        %v1773 = vmul.f32 %v1756, %v1772
        %v1775 = vperm.slane %v1750, 0
        %v1777 = vmul.f32 %v1773, %v1775
        %v1779 = vperm.slane %v1751, 0
        %v1781 = vadd.f32 %v1777, %v1779
        %v1782 = vpack.c.bf16 %v1781, %v1781
        %v1783 = vld [vmem:[%s1047] sm:$0xf]
        %v1784 = vld [vmem:[%s1047 + $0x4] sm:$0xf]
        %v1785 = vld [vmem:[%s1047 + $0x8] sm:$0xf]
        %v1786 = vld [vmem:[%s1047 + $0xc] sm:$0xf]
        %v1787 = vld [vmem:[%s1244] sm:$0x1]
        %v1789 = vperm.slane %v1787, 0
        %v1795 = vunpack.c.l.b16 %v1783
        %v1796 = vunpack.c.l.b16 %v1784
        %v1797 = vunpack.c.l.b16 %v1785
        %v1798 = vunpack.c.l.b16 %v1786
        %v1799 = vpack.c.b16 %v1796, %v1795
        %v1800 = vpack.c.b16 %v1798, %v1797
        %v1804 = vsel %vm1286, %v1782, 0
        %1806 = vmatpush.bf16.msra.mxu0 0
        %1807 = vmatpush.bf16.msra.mxu0 0
        %1808 = vmatpush.bf16.msra.mxu0 0
        %1809 = vmatpush.bf16.msra.mxu0 0
        %1810 = vmatpush.bf16.msra.mxu0 0
        %1811 = vmatpush.bf16.msra.mxu0 0
        %1812 = vmatpush.bf16.msra.mxu0 %v1800
        %1813 = vmatpush.bf16.msra.mxu0 %v1799
        %1814 = vmatmul.bf16.gmra.mxu0 %v1804
        %v1815 = vpop.f32.mrf.mxu0
        %v1816 = vadd.f32 %v1789, %v1815
        %v1817 = vpop.f32.mrf.mxu0
        %1818 = vdwg.mxu0
        %v1819 = vmax.f32 %v1816, 0.0
        %v1820 = vpack.c.bf16 %v1819, %v1819
        %v1821 = vld [vmem:[%s1249] sm:$0xf]
        %v1822 = vld [vmem:[%s1249 + $0x4] sm:$0xf]
        %v1823 = vld [vmem:[%s1249 + $0x8] sm:$0xf]
        %v1824 = vld [vmem:[%s1249 + $0xc] sm:$0xf]
        %v1825 = vld [vmem:[%s1249 + $0x10] sm:$0xf]
        %v1826 = vld [vmem:[%s1249 + $0x14] sm:$0xf]
        %v1827 = vld [vmem:[%s1249 + $0x18] sm:$0xf]
        %v1828 = vld [vmem:[%s1249 + $0x1c] sm:$0xf]
        %v1829 = vld [vmem:[%s1252] sm:$0x1]
        %v1831 = vperm.slane %v1829, 0
        %v1841 = vunpack.c.l.b16 %v1821
        %v1842 = vunpack.c.l.b16 %v1822
        %v1843 = vunpack.c.l.b16 %v1823
        %v1844 = vunpack.c.l.b16 %v1824
        %v1845 = vunpack.c.l.b16 %v1825
        %v1846 = vunpack.c.l.b16 %v1826
        %v1847 = vunpack.c.l.b16 %v1827
        %v1848 = vunpack.c.l.b16 %v1828
        %v1849 = vpack.c.b16 %v1842, %v1841
        %v1850 = vpack.c.b16 %v1844, %v1843
        %v1851 = vpack.c.b16 %v1846, %v1845
        %v1852 = vpack.c.b16 %v1848, %v1847
        %vm1857 = vcmask 523264
        %v1859 = vsel %vm1857, %v1820, 0
        %1861 = vmatpush.bf16.msra.mxu0 0
        %1862 = vmatpush.bf16.msra.mxu0 0
        %1863 = vmatpush.bf16.msra.mxu0 0
        %1864 = vmatpush.bf16.msra.mxu0 0
        %1865 = vmatpush.bf16.msra.mxu0 %v1852
        %1866 = vmatpush.bf16.msra.mxu0 %v1851
        %1867 = vmatpush.bf16.msra.mxu0 %v1850
        %1868 = vmatpush.bf16.msra.mxu0 %v1849
        %1869 = vmatmul.bf16.gmra.mxu0 %v1859
        %v1870 = vpop.f32.mrf.mxu0
        %v1871 = vadd.f32 %v1831, %v1870
        %v1872 = vpop.f32.mrf.mxu0
        %1873 = vdwg.mxu0
        %v1874 = vadd.f32 %v1781, %v1871
        %v1875 = vld [vmem:[%s1056] sm:$0x1]
        %v1876 = vld [vmem:[%s1255] sm:$0x1]
        %v1877 = vsel %vm1286, %v1874, 0.0
        %1878 = vadd.xlane.f32.xlu0 %v1877
        %v1879 = vpop.xlane.xlu0 %1878
        %v1880 = vmul.f32 %v1879, %v1481
        %v1881 = vsub.f32 %v1874, %v1880
        %v1882 = vmul.f32 %v1881, %v1881
        %v1883 = vsel %vm1286, %v1882, 0.0
        %1884 = vadd.xlane.f32.xlu0 %v1883
        %v1885 = vpop.xlane.xlu0 %1884
        %v1886 = vmul.f32 %v1885, %v1481
        %v1887 = vadd.f32 %v1886, 1e-05
        %v1888 = vrsqrt.pop %v1887
        %v1889 = vmul.f32 %v1888, %v1887
        %v1890 = vmul.f32 %v1889, %v1888
        %v1891 = vmul.f32 0.5, %v1890
        %v1892 = vsub.f32 1.5, %v1891
        %v1893 = vmul.f32 %v1888, %v1892
        %vm1894 = vweird.f32 %v1887
        %vm1895 = vweird.f32 %v1888
        %vm1896 = vmor %vm1894, %vm1895
        %v1897 = vsel %vm1896, %v1888, %v1893
        %v1898 = vmul.f32 %v1881, %v1897
        %v1900 = vperm.slane %v1875, 0
        %v1902 = vmul.f32 %v1898, %v1900
        %v1904 = vperm.slane %v1876, 0
        %v1906 = vadd.f32 %v1902, %v1904
        %1907 = vst.msk [vmem:[#allocation2] sm:$0xff] %vm1286, %v1906
        %p1908 = scmp.eq.s32.totalorder %s57, 1
        // Predicated region
        $region153: #{tpu_custom_call.1} parent=111 // pred_check
          %p1909 = pneg %p1908
        $region154: #{tpu_custom_call.1} parent=111 // pred_check_branch
          %1911 = sbr.rel (%p1909) target = $region156
        $region155: #{tpu_custom_call.1} parent=111 // pred_region
          %1912 = vst.msk [vmem:[%s1205] sm:$0xff] %vm1286, %v1906
        $region156: #{tpu_custom_call.1} parent=111 // pred_fallthru
          _
        %s1913 = sand.u32 %s670, 1
        %s1914 = scalar_lea.sflag [#allocation5], %s1913
        %s1915 = sand.u32 %s670, 1
        %s1916 = smul.addr %s1915, 8
        %s1917 = scalar_lea.vmem [#allocation18], %s1916
        // Predicated region
        $region157: #{tpu_custom_call.1} parent=111 // pred_check
          %p1918 = pneg %p680
        $region158: #{tpu_custom_call.1} parent=111 // pred_check_branch
          %1920 = sbr.rel (%p1918) target = $region160
        $region159: #{tpu_custom_call.1} parent=111 // pred_region
          %1922 = vsyncadd %s1914, 0
          %s1923 = smul.addr %s56, 8
          %s1924 = scalar_lea.hbm %s23, %s1923
          %s1926 = sshll.u32 %s1917, 4
          %s1927 = int_to_ptr.vmem [resolvable:$true] %s1926
          %s1928 = sshll.u32 %s1924, 4
          %s1929 = int_to_ptr.hbm [resolvable:$true] %s1928
          %1931 = dma.vmem_to_hbm [thread:$0]  %s1927, 128, %s1929, %s1914
        $region160: #{tpu_custom_call.1} parent=111 // pred_fallthru
          _
      $region112: #{tpu_custom_call.1} parent=5 // pred_fallthru
        _
      %p1932 = scmp.le.s32.totalorder 2, %s47
      // Predicated region
      $region161: #{tpu_custom_call.1} parent=5 // pred_check
        %p1933 = pneg %p1932
      $region162: #{tpu_custom_call.1} parent=5 // pred_check_branch
        %1935 = sbr.rel (%p1933) target = $region164
      $region163: #{tpu_custom_call.1} parent=5 // pred_region
        %s1936 = ssub.s32 %s47, 2
        // Predicated region
        $region165: #{tpu_custom_call.1} parent=163 // pred_check
          %p1937 = pneg %p686
        $region166: #{tpu_custom_call.1} parent=163 // pred_check_branch
          %1939 = sbr.rel (%p1937) target = $region168
        $region167: #{tpu_custom_call.1} parent=163 // pred_region
          %s1940 = sand.u32 %s671, 1
          %s1941 = scalar_lea.sflag [#allocation5], %s1940
          %s1942 = sand.u32 %s671, 1
          %s1943 = smul.addr %s1942, 8
          %s1944 = scalar_lea.vmem [#allocation18], %s1943
          %1946 = dma.done %s1941, 128
        $region168: #{tpu_custom_call.1} parent=163 // pred_fallthru
          _
      $region164: #{tpu_custom_call.1} parent=5 // pred_fallthru
        _
    $region6: #{tpu_custom_call.1} parent=1 // loop_footer
      %s51 = sadd.s32 1, %s47
    $region7: #{tpu_custom_call.1} parent=1 // loop_footer_branch
      %46 = sbr.rel target = $region3
    $region8: #{tpu_custom_call.1} parent=1 // loop_exit
      _
    %1947 = vsyncpa [#allocation4], 1
    %s1948 = scalar_lea.sflag [#allocation4], 1
    %1949 = vsyncpa %s1948, 1
    %1950 = vsyncpa [#allocation7], 1
    %s1951 = scalar_lea.sflag [#allocation7], 1
    %1952 = vsyncpa %s1951, 1
    %1953 = vsyncpa [#allocation10], 1
    %s1954 = scalar_lea.sflag [#allocation10], 1
    %1955 = vsyncpa %s1954, 1
    %1956 = vsyncpa [#allocation13], 1
    %s1957 = scalar_lea.sflag [#allocation13], 1
    %1958 = vsyncpa %s1957, 1
    %1959 = vsyncpa [#allocation16], 1
    %s1960 = scalar_lea.sflag [#allocation16], 1
    %1961 = vsyncpa %s1960, 1
    %1962 = vsyncpa [#allocation5], 1
    %s1963 = scalar_lea.sflag [#allocation5], 1
    %1964 = vsyncpa %s1963, 1

</llo_original>
